<compile_context>
chip_gen: v7x
topology: tpu7x:2x2x1
jax: 0.10.0
libtpu: 0.0.40
codegen_flags: <defaults>
</compile_context>

<pallas_src>
import functools
import numpy as np
import jax
import jax.numpy as jnp
from jax.experimental import pallas as pl
from jax.experimental.pallas import tpu as pltpu  # noqa: F401  (kept for TPU-specific extensions)


# ----------------------------------------------------------------------------
# Fused kernel: history projection + LSTM + dot-attention + fc_final + log_softmax
# ----------------------------------------------------------------------------
def _fused_kernel(target_len,
                  x_ref, hist2_ref, wa_ref, ba_ref,
                  wih_ref, whh_ref, bl_ref,
                  wfo_ref, wfc_ref, bias_ref,
                  score_ref):
    S = x_ref.shape[0]
    H = whh_ref.shape[0]
    T = target_len

    # --- history = tanh(history2 @ W_attn^T + b_attn)                     (N, H)
    hist = jnp.tanh(
        jnp.dot(hist2_ref[...], wa_ref[...], preferred_element_type=jnp.float32)
        + ba_ref[...]
    )

    # --- LSTM input contribution for all timesteps in one MXU call        (S, 4H)
    xw = (
        jnp.dot(x_ref[...], wih_ref[...], preferred_element_type=jnp.float32)
        + bl_ref[...]
    )
    whh = whh_ref[...]

    # lane mask for the 'g' (tanh) gate, hoisted out of the recurrence
    lane = jax.lax.broadcasted_iota(jnp.int32, (1, 4 * H), 1)
    g_mask = (lane >= 2 * H) & (lane < 3 * H)

    # --- fully-unrolled LSTM recurrence, state kept in registers
    h = jnp.zeros((1, H), jnp.float32)
    c = jnp.zeros((1, H), jnp.float32)
    hs = []
    for t in range(S):  # S is static and small -> unroll with static indices
        gates = xw[t:t + 1, :] + jnp.dot(
            h, whh, preferred_element_type=jnp.float32)          # (1, 4H)
        act = jnp.where(g_mask, jnp.tanh(gates), jax.nn.sigmoid(gates))
        i_g = act[:, 0:H]
        f_g = act[:, H:2 * H]
        g_g = act[:, 2 * H:3 * H]
        o_g = act[:, 3 * H:4 * H]
        c = f_g * c + i_g * g_g
        h = o_g * jnp.tanh(c)
        hs.append(h)

    out_tail = jnp.concatenate(hs[S - T:], axis=0)                # (T, H)

    # --- dot attention over the long-term history + softmax (history axis)
    energies = jax.lax.dot_general(
        out_tail, hist, (((1,), (1,)), ((), ())),
        preferred_element_type=jnp.float32)                       # (T, N)
    m = jnp.max(energies, axis=1, keepdims=True)
    e = jnp.exp(energies - m)
    attn = e * pl.reciprocal(jnp.sum(e, axis=1, keepdims=True), approx=True)
    context = jnp.dot(attn, hist, preferred_element_type=jnp.float32)  # (T, H)

    # --- fc_final (uid embedding + bias folded into bias_ref) + log_softmax
    y = (
        jnp.dot(out_tail, wfo_ref[...], preferred_element_type=jnp.float32)
        + jnp.dot(context, wfc_ref[...], preferred_element_type=jnp.float32)
        + bias_ref[...]
    )                                                             # (T, L)
    ym = jnp.max(y, axis=1, keepdims=True)
    z = y - ym
    lse = jnp.log(jnp.sum(jnp.exp(z), axis=1, keepdims=True))
    score_ref[...] = z - lse


def fused_forward(x, hist2, wa_t, ba, wih_t, whh_t, bl, wf_out, wf_ctx,
                  bias_total, target_len):
    S, D = x.shape
    N = hist2.shape[0]
    H = whh_t.shape[0]
    L = wf_out.shape[1]
    T = int(target_len)
    kernel = functools.partial(_fused_kernel, T)
    return pl.pallas_call(
        kernel,
        out_shape=jax.ShapeDtypeStruct((T, L), jnp.float32),
        grid=(1,),
        in_specs=[
            pl.BlockSpec((S, D), lambda i: (0, 0)),        # x
            pl.BlockSpec((N, D), lambda i: (0, 0)),        # history2
            pl.BlockSpec((D, H), lambda i: (0, 0)),        # W_attn^T
            pl.BlockSpec((1, H), lambda i: (0, 0)),        # b_attn
            pl.BlockSpec((D, 4 * H), lambda i: (0, 0)),    # W_ih^T
            pl.BlockSpec((H, 4 * H), lambda i: (0, 0)),    # W_hh^T
            pl.BlockSpec((1, 4 * H), lambda i: (0, 0)),    # b_ih + b_hh
            pl.BlockSpec((H, L), lambda i: (0, 0)),        # W_final (out cols)^T
            pl.BlockSpec((H, L), lambda i: (0, 0)),        # W_final (ctx cols)^T
            pl.BlockSpec((1, L), lambda i: (0, 0)),        # uid@W_final_uid + b_final
        ],
        out_specs=pl.BlockSpec((T, L), lambda i: (0, 0)),
    )(x, hist2, wa_t, ba, wih_t, whh_t, bl, wf_out, wf_ctx, bias_total)


# ----------------------------------------------------------------------------
# Static history-group averaging matrices (built once from host-side counts)
# ----------------------------------------------------------------------------
def build_history_matrices(history_count):
    counts = [int(c) for c in history_count]
    n_hist = len(counts)
    hist_len = int(sum(counts))
    a_loc = np.zeros((n_hist, hist_len), np.float32)   # mean over each group
    a_tim = np.zeros((n_hist, hist_len), np.float32)   # first element of each group
    off = 0
    for i, c in enumerate(counts):
        c_safe = max(c, 1)                              # guard against zero counts
        a_loc[i, off:off + c_safe] = 1.0 / float(c_safe)
        a_tim[i, off] = 1.0
        off += c
    return jnp.asarray(a_loc), jnp.asarray(a_tim)


# ----------------------------------------------------------------------------
# Full forward pass (embedding gathers / weight transposes are glue; one kernel)
# ----------------------------------------------------------------------------
def traj_pre_attn_forward(params, loc, tim, history_loc, history_tim,
                          a_loc, a_tim, uid, target_len):
    # embeddings (gathers are glue); dropout is eval-mode identity
    loc_emb = params["emb_loc"][loc[:, 0]]              # (S, loc_emb)
    tim_emb = params["emb_tim"][tim[:, 0]]              # (S, tim_emb)
    x = jnp.concatenate([loc_emb, tim_emb], axis=1)     # (S, input)

    loc_emb_hist = params["emb_loc"][history_loc[:, 0]]  # (Lh, loc_emb)
    tim_emb_hist = params["emb_tim"][history_tim[:, 0]]  # (Lh, tim_emb)
    # group-average (loc) / first-of-group (tim) via static matmuls
    hist2 = jnp.concatenate(
        [a_loc @ loc_emb_hist, a_tim @ tim_emb_hist], axis=1)    # (n_hist, input)

    uid_emb = params["emb_uid"][uid]                    # (1, U)
    H = params["w_hh"].shape[1]
    wf = params["w_final"]                              # (L, 2H + U)
    wf_out = wf[:, :H].T                                # (H, L)
    wf_ctx = wf[:, H:2 * H].T                           # (H, L)
    wf_uid = wf[:, 2 * H:].T                            # (U, L)
    # uid contribution + final bias folded into one (1, L) row
    bias_total = uid_emb @ wf_uid + params["b_final"][None, :]

    return fused_forward(
        x, hist2,
        params["w_attn"].T, params["b_attn"][None, :],
        params["w_ih"].T, params["w_hh"].T,
        (params["b_ih"] + params["b_hh"])[None, :],
        wf_out, wf_ctx, bias_total, target_len)


# ----------------------------------------------------------------------------
# Pure-JAX reference for correctness checking
# ----------------------------------------------------------------------------
def traj_pre_attn_reference(params, loc, tim, history_loc, history_tim,
                            a_loc, a_tim, uid, target_len):
    loc_emb = params["emb_loc"][loc[:, 0]]
    tim_emb = params["emb_tim"][tim[:, 0]]
    x = jnp.concatenate([loc_emb, tim_emb], axis=1)

    loc_emb_hist = params["emb_loc"][history_loc[:, 0]]
    tim_emb_hist = params["emb_tim"][history_tim[:, 0]]
    hist2 = jnp.concatenate([a_loc @ loc_emb_hist, a_tim @ tim_emb_hist], axis=1)
    hist = jnp.tanh(hist2 @ params["w_attn"].T + params["b_attn"][None, :])

    H = params["w_hh"].shape[1]
    wih_t = params["w_ih"].T
    whh_t = params["w_hh"].T
    bl = (params["b_ih"] + params["b_hh"])[None, :]
    S = x.shape[0]
    h = jnp.zeros((1, H), jnp.float32)
    c = jnp.zeros((1, H), jnp.float32)
    outs = []
    for t in range(S):
        gates = x[t:t + 1] @ wih_t + bl + h @ whh_t
        i_g = jax.nn.sigmoid(gates[:, 0:H])
        f_g = jax.nn.sigmoid(gates[:, H:2 * H])
        g_g = jnp.tanh(gates[:, 2 * H:3 * H])
        o_g = jax.nn.sigmoid(gates[:, 3 * H:4 * H])
        c = f_g * c + i_g * g_g
        h = o_g * jnp.tanh(c)
        outs.append(h)
    out_state = jnp.concatenate(outs, axis=0)
    out_tail = out_state[S - target_len:]

    energies = out_tail @ hist.T
    attn = jax.nn.softmax(energies, axis=1)
    context = attn @ hist
    uid_emb = params["emb_uid"][uid]
    feats = jnp.concatenate(
        [out_tail, context, jnp.tile(uid_emb, (target_len, 1))], axis=1)
    y = feats @ params["w_final"].T + params["b_final"][None, :]
    return jax.nn.log_softmax(y, axis=1)


if __name__ == "__main__":
    # hyper-parameters (the module's __init__ shapes)
    loc_size, loc_emb_size = 128, 32
    tim_size, tim_emb_size = 48, 16
    uid_size, uid_emb_size = 10, 16
    hidden_size = 32
    input_size = loc_emb_size + tim_emb_size
    seq_len, target_len = 8, 4
    history_count = [3, 1, 4, 2]                 # host-side counts (sum = hist_len)
    hist_len = int(np.sum(history_count))

    key = jax.random.PRNGKey(0)
    keys = jax.random.split(key, 16)

    params = {
        "emb_loc": jax.random.normal(keys[0], (loc_size, loc_emb_size), jnp.float32),
        "emb_tim": jax.random.normal(keys[1], (tim_size, tim_emb_size), jnp.float32),
        "emb_uid": jax.random.normal(keys[2], (uid_size, uid_emb_size), jnp.float32),
        "w_attn": 0.1 * jax.random.normal(keys[3], (hidden_size, input_size), jnp.float32),
        "b_attn": jnp.zeros((hidden_size,), jnp.float32),
        "w_ih": 0.1 * jax.random.normal(keys[4], (4 * hidden_size, input_size), jnp.float32),
        "w_hh": 0.1 * jax.random.normal(keys[5], (4 * hidden_size, hidden_size), jnp.float32),
        "b_ih": jnp.zeros((4 * hidden_size,), jnp.float32),
        "b_hh": jnp.zeros((4 * hidden_size,), jnp.float32),
        "w_final": 0.1 * jax.random.normal(
            keys[6], (loc_size, 2 * hidden_size + uid_emb_size), jnp.float32),
        "b_final": jnp.zeros((loc_size,), jnp.float32),
    }

    loc = jax.random.randint(keys[7], (seq_len, 1), 0, loc_size, dtype=jnp.int32)
    tim = jax.random.randint(keys[8], (seq_len, 1), 0, tim_size, dtype=jnp.int32)
    history_loc = jax.random.randint(keys[9], (hist_len, 1), 0, loc_size, dtype=jnp.int32)
    history_tim = jax.random.randint(keys[10], (hist_len, 1), 0, tim_size, dtype=jnp.int32)
    uid = jax.random.randint(keys[11], (1,), 0, uid_size, dtype=jnp.int32)

    a_loc, a_tim = build_history_matrices(history_count)

    score = traj_pre_attn_forward(params, loc, tim, history_loc, history_tim,
                                  a_loc, a_tim, uid, target_len)
    score = jax.block_until_ready(score)

    assert score.shape == (target_len, loc_size)
    # rows of log_softmax should exp-sum to 1
    assert np.allclose(np.exp(np.asarray(score)).sum(axis=1), 1.0, atol=1e-4)

    # compare against pure-JAX reference (approx reciprocal in softmax -> loose atol)
    ref = traj_pre_attn_reference(params, loc, tim, history_loc, history_tim,
                                  a_loc, a_tim, uid, target_len)
    np.testing.assert_allclose(np.asarray(score), np.asarray(ref),
                               atol=5e-3, rtol=1e-3)
    print("KERNEL_OK")
</pallas_src>

<mosaic_0001>
module attributes {stable_mosaic.version = 11 : i64} {
  func.func @_fused_kernel(%arg0: i32, %arg1: memref<8x48xf32, #tpu.memory_space<vmem>>, %arg2: memref<4x48xf32, #tpu.memory_space<vmem>>, %arg3: memref<48x32xf32, #tpu.memory_space<vmem>>, %arg4: memref<1x32xf32, #tpu.memory_space<vmem>>, %arg5: memref<48x128xf32, #tpu.memory_space<vmem>>, %arg6: memref<32x128xf32, #tpu.memory_space<vmem>>, %arg7: memref<1x128xf32, #tpu.memory_space<vmem>>, %arg8: memref<32x128xf32, #tpu.memory_space<vmem>>, %arg9: memref<32x128xf32, #tpu.memory_space<vmem>>, %arg10: memref<1x128xf32, #tpu.memory_space<vmem>>, %arg11: memref<4x128xf32, #tpu.memory_space<vmem>>) attributes {dimension_semantics = [#tpu.dimension_semantics<arbitrary>], iteration_bounds = array<i64: 1>, scalar_prefetch = 0 : i64, scratch_operands = 0 : i64, tpu.core_type = #tpu.core_type<tc>, window_params = [{pipeline_mode = #tpu.pipeline_mode<synchronous>, transform_indices = @transform_0, window_bounds = array<i64: 8, 48>}, {pipeline_mode = #tpu.pipeline_mode<synchronous>, transform_indices = @transform_1, window_bounds = array<i64: 4, 48>}, {pipeline_mode = #tpu.pipeline_mode<synchronous>, transform_indices = @transform_2, window_bounds = array<i64: 48, 32>}, {pipeline_mode = #tpu.pipeline_mode<synchronous>, transform_indices = @transform_3, window_bounds = array<i64: 1, 32>}, {pipeline_mode = #tpu.pipeline_mode<synchronous>, transform_indices = @transform_4, window_bounds = array<i64: 48, 128>}, {pipeline_mode = #tpu.pipeline_mode<synchronous>, transform_indices = @transform_5, window_bounds = array<i64: 32, 128>}, {pipeline_mode = #tpu.pipeline_mode<synchronous>, transform_indices = @transform_6, window_bounds = array<i64: 1, 128>}, {pipeline_mode = #tpu.pipeline_mode<synchronous>, transform_indices = @transform_7, window_bounds = array<i64: 32, 128>}, {pipeline_mode = #tpu.pipeline_mode<synchronous>, transform_indices = @transform_8, window_bounds = array<i64: 32, 128>}, {pipeline_mode = #tpu.pipeline_mode<synchronous>, transform_indices = @transform_9, window_bounds = array<i64: 1, 128>}, {pipeline_mode = #tpu.pipeline_mode<synchronous>, transform_indices = @transform_10, window_bounds = array<i64: 4, 128>}]} {
    %c0 = arith.constant 0 : index
    %c0_0 = arith.constant 0 : index
    %0 = vector.load %arg2[%c0, %c0_0] : memref<4x48xf32, #tpu.memory_space<vmem>>, vector<4x48xf32>
    %c0_1 = arith.constant 0 : index
    %c0_2 = arith.constant 0 : index
    %1 = vector.load %arg3[%c0_1, %c0_2] : memref<48x32xf32, #tpu.memory_space<vmem>>, vector<48x32xf32>
    %cst = arith.constant dense<0.000000e+00> : vector<4x32xf32>
    %2 = tpu.matmul %0, %1, %cst {dimension_numbers = #tpu.dot_dimension_numbers<[1], [0], [0], [1], [0, 0, 1, 1], [], []>} : vector<4x48xf32>, vector<48x32xf32>, vector<4x32xf32> -> vector<4x32xf32>
    %c0_3 = arith.constant 0 : index
    %c0_4 = arith.constant 0 : index
    %3 = vector.load %arg4[%c0_3, %c0_4] : memref<1x32xf32, #tpu.memory_space<vmem>>, vector<1x32xf32>
    %4 = vector.broadcast %3 : vector<1x32xf32> to vector<4x32xf32>
    %5 = arith.addf %2, %4 : vector<4x32xf32>
    %6 = math.tanh %5 : vector<4x32xf32>
    %c0_5 = arith.constant 0 : index
    %c0_6 = arith.constant 0 : index
    %7 = vector.load %arg1[%c0_5, %c0_6] : memref<8x48xf32, #tpu.memory_space<vmem>>, vector<8x48xf32>
    %c0_7 = arith.constant 0 : index
    %c0_8 = arith.constant 0 : index
    %8 = vector.load %arg5[%c0_7, %c0_8] : memref<48x128xf32, #tpu.memory_space<vmem>>, vector<48x128xf32>
    %cst_9 = arith.constant dense<0.000000e+00> : vector<8x128xf32>
    %9 = tpu.matmul %7, %8, %cst_9 {dimension_numbers = #tpu.dot_dimension_numbers<[1], [0], [0], [1], [0, 0, 1, 1], [], []>} : vector<8x48xf32>, vector<48x128xf32>, vector<8x128xf32> -> vector<8x128xf32>
    %c0_10 = arith.constant 0 : index
    %c0_11 = arith.constant 0 : index
    %10 = vector.load %arg7[%c0_10, %c0_11] : memref<1x128xf32, #tpu.memory_space<vmem>>, vector<1x128xf32>
    %11 = vector.broadcast %10 : vector<1x128xf32> to vector<8x128xf32>
    %12 = arith.addf %9, %11 : vector<8x128xf32>
    %c0_12 = arith.constant 0 : index
    %c0_13 = arith.constant 0 : index
    %13 = vector.load %arg6[%c0_12, %c0_13] : memref<32x128xf32, #tpu.memory_space<vmem>>, vector<32x128xf32>
    %14 = tpu.iota {dimensions = array<i32: 1>} : vector<1x128xi32>
    %c64_i32 = arith.constant 64 : i32
    %15 = vector.broadcast %c64_i32 : i32 to vector<1x128xi32>
    %16 = arith.cmpi sge, %14, %15 : vector<1x128xi32>
    %c96_i32 = arith.constant 96 : i32
    %17 = vector.broadcast %c96_i32 : i32 to vector<1x128xi32>
    %18 = arith.cmpi slt, %14, %17 : vector<1x128xi32>
    %19 = arith.andi %16, %18 : vector<1x128xi1>
    %cst_14 = arith.constant 0.000000e+00 : f32
    %20 = vector.broadcast %cst_14 : f32 to vector<1x32xf32>
    %cst_15 = arith.constant 0.000000e+00 : f32
    %21 = vector.broadcast %cst_15 : f32 to vector<1x32xf32>
    %22 = vector.extract_strided_slice %12 {offsets = [0, 0], sizes = [1, 128], strides = [1, 1]} : vector<8x128xf32> to vector<1x128xf32>
    %cst_16 = arith.constant dense<0.000000e+00> : vector<1x128xf32>
    %23 = tpu.matmul %20, %13, %cst_16 {dimension_numbers = #tpu.dot_dimension_numbers<[1], [0], [0], [1], [0, 0, 1, 1], [], []>} : vector<1x32xf32>, vector<32x128xf32>, vector<1x128xf32> -> vector<1x128xf32>
    %24 = arith.addf %22, %23 : vector<1x128xf32>
    %25 = math.tanh %24 : vector<1x128xf32>
    %26 = arith.negf %24 : vector<1x128xf32>
    %27 = math.exp %26 : vector<1x128xf32>
    %cst_17 = arith.constant 1.000000e+00 : f32
    %28 = vector.broadcast %cst_17 : f32 to vector<1x128xf32>
    %29 = arith.addf %28, %27 : vector<1x128xf32>
    %30 = arith.divf %28, %29 : vector<1x128xf32>
    %31 = arith.select %19, %25, %30 : vector<1x128xi1>, vector<1x128xf32>
    %32 = vector.extract_strided_slice %31 {offsets = [0, 0], sizes = [1, 32], strides = [1, 1]} : vector<1x128xf32> to vector<1x32xf32>
    %33 = vector.extract_strided_slice %31 {offsets = [0, 32], sizes = [1, 32], strides = [1, 1]} : vector<1x128xf32> to vector<1x32xf32>
    %34 = vector.extract_strided_slice %31 {offsets = [0, 64], sizes = [1, 32], strides = [1, 1]} : vector<1x128xf32> to vector<1x32xf32>
    %35 = vector.extract_strided_slice %31 {offsets = [0, 96], sizes = [1, 32], strides = [1, 1]} : vector<1x128xf32> to vector<1x32xf32>
    %36 = arith.mulf %33, %21 : vector<1x32xf32>
    %37 = arith.mulf %32, %34 : vector<1x32xf32>
    %38 = arith.addf %36, %37 : vector<1x32xf32>
    %39 = math.tanh %38 : vector<1x32xf32>
    %40 = arith.mulf %35, %39 : vector<1x32xf32>
    %41 = vector.extract_strided_slice %12 {offsets = [1, 0], sizes = [1, 128], strides = [1, 1]} : vector<8x128xf32> to vector<1x128xf32>
    %cst_18 = arith.constant dense<0.000000e+00> : vector<1x128xf32>
    %42 = tpu.matmul %40, %13, %cst_18 {dimension_numbers = #tpu.dot_dimension_numbers<[1], [0], [0], [1], [0, 0, 1, 1], [], []>} : vector<1x32xf32>, vector<32x128xf32>, vector<1x128xf32> -> vector<1x128xf32>
    %43 = arith.addf %41, %42 : vector<1x128xf32>
    %44 = math.tanh %43 : vector<1x128xf32>
    %45 = arith.negf %43 : vector<1x128xf32>
    %46 = math.exp %45 : vector<1x128xf32>
    %cst_19 = arith.constant 1.000000e+00 : f32
    %47 = vector.broadcast %cst_19 : f32 to vector<1x128xf32>
    %48 = arith.addf %47, %46 : vector<1x128xf32>
    %49 = arith.divf %47, %48 : vector<1x128xf32>
    %50 = arith.select %19, %44, %49 : vector<1x128xi1>, vector<1x128xf32>
    %51 = vector.extract_strided_slice %50 {offsets = [0, 0], sizes = [1, 32], strides = [1, 1]} : vector<1x128xf32> to vector<1x32xf32>
    %52 = vector.extract_strided_slice %50 {offsets = [0, 32], sizes = [1, 32], strides = [1, 1]} : vector<1x128xf32> to vector<1x32xf32>
    %53 = vector.extract_strided_slice %50 {offsets = [0, 64], sizes = [1, 32], strides = [1, 1]} : vector<1x128xf32> to vector<1x32xf32>
    %54 = vector.extract_strided_slice %50 {offsets = [0, 96], sizes = [1, 32], strides = [1, 1]} : vector<1x128xf32> to vector<1x32xf32>
    %55 = arith.mulf %52, %38 : vector<1x32xf32>
    %56 = arith.mulf %51, %53 : vector<1x32xf32>
    %57 = arith.addf %55, %56 : vector<1x32xf32>
    %58 = math.tanh %57 : vector<1x32xf32>
    %59 = arith.mulf %54, %58 : vector<1x32xf32>
    %60 = vector.extract_strided_slice %12 {offsets = [2, 0], sizes = [1, 128], strides = [1, 1]} : vector<8x128xf32> to vector<1x128xf32>
    %cst_20 = arith.constant dense<0.000000e+00> : vector<1x128xf32>
    %61 = tpu.matmul %59, %13, %cst_20 {dimension_numbers = #tpu.dot_dimension_numbers<[1], [0], [0], [1], [0, 0, 1, 1], [], []>} : vector<1x32xf32>, vector<32x128xf32>, vector<1x128xf32> -> vector<1x128xf32>
    %62 = arith.addf %60, %61 : vector<1x128xf32>
    %63 = math.tanh %62 : vector<1x128xf32>
    %64 = arith.negf %62 : vector<1x128xf32>
    %65 = math.exp %64 : vector<1x128xf32>
    %cst_21 = arith.constant 1.000000e+00 : f32
    %66 = vector.broadcast %cst_21 : f32 to vector<1x128xf32>
    %67 = arith.addf %66, %65 : vector<1x128xf32>
    %68 = arith.divf %66, %67 : vector<1x128xf32>
    %69 = arith.select %19, %63, %68 : vector<1x128xi1>, vector<1x128xf32>
    %70 = vector.extract_strided_slice %69 {offsets = [0, 0], sizes = [1, 32], strides = [1, 1]} : vector<1x128xf32> to vector<1x32xf32>
    %71 = vector.extract_strided_slice %69 {offsets = [0, 32], sizes = [1, 32], strides = [1, 1]} : vector<1x128xf32> to vector<1x32xf32>
    %72 = vector.extract_strided_slice %69 {offsets = [0, 64], sizes = [1, 32], strides = [1, 1]} : vector<1x128xf32> to vector<1x32xf32>
    %73 = vector.extract_strided_slice %69 {offsets = [0, 96], sizes = [1, 32], strides = [1, 1]} : vector<1x128xf32> to vector<1x32xf32>
    %74 = arith.mulf %71, %57 : vector<1x32xf32>
    %75 = arith.mulf %70, %72 : vector<1x32xf32>
    %76 = arith.addf %74, %75 : vector<1x32xf32>
    %77 = math.tanh %76 : vector<1x32xf32>
    %78 = arith.mulf %73, %77 : vector<1x32xf32>
    %79 = vector.extract_strided_slice %12 {offsets = [3, 0], sizes = [1, 128], strides = [1, 1]} : vector<8x128xf32> to vector<1x128xf32>
    %cst_22 = arith.constant dense<0.000000e+00> : vector<1x128xf32>
    %80 = tpu.matmul %78, %13, %cst_22 {dimension_numbers = #tpu.dot_dimension_numbers<[1], [0], [0], [1], [0, 0, 1, 1], [], []>} : vector<1x32xf32>, vector<32x128xf32>, vector<1x128xf32> -> vector<1x128xf32>
    %81 = arith.addf %79, %80 : vector<1x128xf32>
    %82 = math.tanh %81 : vector<1x128xf32>
    %83 = arith.negf %81 : vector<1x128xf32>
    %84 = math.exp %83 : vector<1x128xf32>
    %cst_23 = arith.constant 1.000000e+00 : f32
    %85 = vector.broadcast %cst_23 : f32 to vector<1x128xf32>
    %86 = arith.addf %85, %84 : vector<1x128xf32>
    %87 = arith.divf %85, %86 : vector<1x128xf32>
    %88 = arith.select %19, %82, %87 : vector<1x128xi1>, vector<1x128xf32>
    %89 = vector.extract_strided_slice %88 {offsets = [0, 0], sizes = [1, 32], strides = [1, 1]} : vector<1x128xf32> to vector<1x32xf32>
    %90 = vector.extract_strided_slice %88 {offsets = [0, 32], sizes = [1, 32], strides = [1, 1]} : vector<1x128xf32> to vector<1x32xf32>
    %91 = vector.extract_strided_slice %88 {offsets = [0, 64], sizes = [1, 32], strides = [1, 1]} : vector<1x128xf32> to vector<1x32xf32>
    %92 = vector.extract_strided_slice %88 {offsets = [0, 96], sizes = [1, 32], strides = [1, 1]} : vector<1x128xf32> to vector<1x32xf32>
    %93 = arith.mulf %90, %76 : vector<1x32xf32>
    %94 = arith.mulf %89, %91 : vector<1x32xf32>
    %95 = arith.addf %93, %94 : vector<1x32xf32>
    %96 = math.tanh %95 : vector<1x32xf32>
    %97 = arith.mulf %92, %96 : vector<1x32xf32>
    %98 = vector.extract_strided_slice %12 {offsets = [4, 0], sizes = [1, 128], strides = [1, 1]} : vector<8x128xf32> to vector<1x128xf32>
    %cst_24 = arith.constant dense<0.000000e+00> : vector<1x128xf32>
    %99 = tpu.matmul %97, %13, %cst_24 {dimension_numbers = #tpu.dot_dimension_numbers<[1], [0], [0], [1], [0, 0, 1, 1], [], []>} : vector<1x32xf32>, vector<32x128xf32>, vector<1x128xf32> -> vector<1x128xf32>
    %100 = arith.addf %98, %99 : vector<1x128xf32>
    %101 = math.tanh %100 : vector<1x128xf32>
    %102 = arith.negf %100 : vector<1x128xf32>
    %103 = math.exp %102 : vector<1x128xf32>
    %cst_25 = arith.constant 1.000000e+00 : f32
    %104 = vector.broadcast %cst_25 : f32 to vector<1x128xf32>
    %105 = arith.addf %104, %103 : vector<1x128xf32>
    %106 = arith.divf %104, %105 : vector<1x128xf32>
    %107 = arith.select %19, %101, %106 : vector<1x128xi1>, vector<1x128xf32>
    %108 = vector.extract_strided_slice %107 {offsets = [0, 0], sizes = [1, 32], strides = [1, 1]} : vector<1x128xf32> to vector<1x32xf32>
    %109 = vector.extract_strided_slice %107 {offsets = [0, 32], sizes = [1, 32], strides = [1, 1]} : vector<1x128xf32> to vector<1x32xf32>
    %110 = vector.extract_strided_slice %107 {offsets = [0, 64], sizes = [1, 32], strides = [1, 1]} : vector<1x128xf32> to vector<1x32xf32>
    %111 = vector.extract_strided_slice %107 {offsets = [0, 96], sizes = [1, 32], strides = [1, 1]} : vector<1x128xf32> to vector<1x32xf32>
    %112 = arith.mulf %109, %95 : vector<1x32xf32>
    %113 = arith.mulf %108, %110 : vector<1x32xf32>
    %114 = arith.addf %112, %113 : vector<1x32xf32>
    %115 = math.tanh %114 : vector<1x32xf32>
    %116 = arith.mulf %111, %115 : vector<1x32xf32>
    %117 = vector.extract_strided_slice %12 {offsets = [5, 0], sizes = [1, 128], strides = [1, 1]} : vector<8x128xf32> to vector<1x128xf32>
    %cst_26 = arith.constant dense<0.000000e+00> : vector<1x128xf32>
    %118 = tpu.matmul %116, %13, %cst_26 {dimension_numbers = #tpu.dot_dimension_numbers<[1], [0], [0], [1], [0, 0, 1, 1], [], []>} : vector<1x32xf32>, vector<32x128xf32>, vector<1x128xf32> -> vector<1x128xf32>
    %119 = arith.addf %117, %118 : vector<1x128xf32>
    %120 = math.tanh %119 : vector<1x128xf32>
    %121 = arith.negf %119 : vector<1x128xf32>
    %122 = math.exp %121 : vector<1x128xf32>
    %cst_27 = arith.constant 1.000000e+00 : f32
    %123 = vector.broadcast %cst_27 : f32 to vector<1x128xf32>
    %124 = arith.addf %123, %122 : vector<1x128xf32>
    %125 = arith.divf %123, %124 : vector<1x128xf32>
    %126 = arith.select %19, %120, %125 : vector<1x128xi1>, vector<1x128xf32>
    %127 = vector.extract_strided_slice %126 {offsets = [0, 0], sizes = [1, 32], strides = [1, 1]} : vector<1x128xf32> to vector<1x32xf32>
    %128 = vector.extract_strided_slice %126 {offsets = [0, 32], sizes = [1, 32], strides = [1, 1]} : vector<1x128xf32> to vector<1x32xf32>
    %129 = vector.extract_strided_slice %126 {offsets = [0, 64], sizes = [1, 32], strides = [1, 1]} : vector<1x128xf32> to vector<1x32xf32>
    %130 = vector.extract_strided_slice %126 {offsets = [0, 96], sizes = [1, 32], strides = [1, 1]} : vector<1x128xf32> to vector<1x32xf32>
    %131 = arith.mulf %128, %114 : vector<1x32xf32>
    %132 = arith.mulf %127, %129 : vector<1x32xf32>
    %133 = arith.addf %131, %132 : vector<1x32xf32>
    %134 = math.tanh %133 : vector<1x32xf32>
    %135 = arith.mulf %130, %134 : vector<1x32xf32>
    %136 = vector.extract_strided_slice %12 {offsets = [6, 0], sizes = [1, 128], strides = [1, 1]} : vector<8x128xf32> to vector<1x128xf32>
    %cst_28 = arith.constant dense<0.000000e+00> : vector<1x128xf32>
    %137 = tpu.matmul %135, %13, %cst_28 {dimension_numbers = #tpu.dot_dimension_numbers<[1], [0], [0], [1], [0, 0, 1, 1], [], []>} : vector<1x32xf32>, vector<32x128xf32>, vector<1x128xf32> -> vector<1x128xf32>
    %138 = arith.addf %136, %137 : vector<1x128xf32>
    %139 = math.tanh %138 : vector<1x128xf32>
    %140 = arith.negf %138 : vector<1x128xf32>
    %141 = math.exp %140 : vector<1x128xf32>
    %cst_29 = arith.constant 1.000000e+00 : f32
    %142 = vector.broadcast %cst_29 : f32 to vector<1x128xf32>
    %143 = arith.addf %142, %141 : vector<1x128xf32>
    %144 = arith.divf %142, %143 : vector<1x128xf32>
    %145 = arith.select %19, %139, %144 : vector<1x128xi1>, vector<1x128xf32>
    %146 = vector.extract_strided_slice %145 {offsets = [0, 0], sizes = [1, 32], strides = [1, 1]} : vector<1x128xf32> to vector<1x32xf32>
    %147 = vector.extract_strided_slice %145 {offsets = [0, 32], sizes = [1, 32], strides = [1, 1]} : vector<1x128xf32> to vector<1x32xf32>
    %148 = vector.extract_strided_slice %145 {offsets = [0, 64], sizes = [1, 32], strides = [1, 1]} : vector<1x128xf32> to vector<1x32xf32>
    %149 = vector.extract_strided_slice %145 {offsets = [0, 96], sizes = [1, 32], strides = [1, 1]} : vector<1x128xf32> to vector<1x32xf32>
    %150 = arith.mulf %147, %133 : vector<1x32xf32>
    %151 = arith.mulf %146, %148 : vector<1x32xf32>
    %152 = arith.addf %150, %151 : vector<1x32xf32>
    %153 = math.tanh %152 : vector<1x32xf32>
    %154 = arith.mulf %149, %153 : vector<1x32xf32>
    %155 = vector.extract_strided_slice %12 {offsets = [7, 0], sizes = [1, 128], strides = [1, 1]} : vector<8x128xf32> to vector<1x128xf32>
    %cst_30 = arith.constant dense<0.000000e+00> : vector<1x128xf32>
    %156 = tpu.matmul %154, %13, %cst_30 {dimension_numbers = #tpu.dot_dimension_numbers<[1], [0], [0], [1], [0, 0, 1, 1], [], []>} : vector<1x32xf32>, vector<32x128xf32>, vector<1x128xf32> -> vector<1x128xf32>
    %157 = arith.addf %155, %156 : vector<1x128xf32>
    %158 = math.tanh %157 : vector<1x128xf32>
    %159 = arith.negf %157 : vector<1x128xf32>
    %160 = math.exp %159 : vector<1x128xf32>
    %cst_31 = arith.constant 1.000000e+00 : f32
    %161 = vector.broadcast %cst_31 : f32 to vector<1x128xf32>
    %162 = arith.addf %161, %160 : vector<1x128xf32>
    %163 = arith.divf %161, %162 : vector<1x128xf32>
    %164 = arith.select %19, %158, %163 : vector<1x128xi1>, vector<1x128xf32>
    %165 = vector.extract_strided_slice %164 {offsets = [0, 0], sizes = [1, 32], strides = [1, 1]} : vector<1x128xf32> to vector<1x32xf32>
    %166 = vector.extract_strided_slice %164 {offsets = [0, 32], sizes = [1, 32], strides = [1, 1]} : vector<1x128xf32> to vector<1x32xf32>
    %167 = vector.extract_strided_slice %164 {offsets = [0, 64], sizes = [1, 32], strides = [1, 1]} : vector<1x128xf32> to vector<1x32xf32>
    %168 = vector.extract_strided_slice %164 {offsets = [0, 96], sizes = [1, 32], strides = [1, 1]} : vector<1x128xf32> to vector<1x32xf32>
    %169 = arith.mulf %166, %152 : vector<1x32xf32>
    %170 = arith.mulf %165, %167 : vector<1x32xf32>
    %171 = arith.addf %169, %170 : vector<1x32xf32>
    %172 = math.tanh %171 : vector<1x32xf32>
    %173 = arith.mulf %168, %172 : vector<1x32xf32>
    %174 = tpu.concatenate %116, %135, %154, %173 in 0 : vector<1x32xf32>, vector<1x32xf32>, vector<1x32xf32>, vector<1x32xf32> -> vector<4x32xf32>
    %cst_32 = arith.constant dense<0.000000e+00> : vector<4x4xf32>
    %175 = tpu.matmul %174, %6, %cst_32 {dimension_numbers = #tpu.dot_dimension_numbers<[1], [1], [0], [0], [0, 0, 1, 0], [], []>} : vector<4x32xf32>, vector<4x32xf32>, vector<4x4xf32> -> vector<4x4xf32>
    %cst_33 = arith.constant dense<0xFF800000> : vector<4xf32>
    %176 = vector.multi_reduction <maximumf>, %175, %cst_33 [1] : vector<4x4xf32> to vector<4xf32>
    %177 = vector.shape_cast %176 : vector<4xf32> to vector<4x1xf32>
    %178 = vector.broadcast %177 : vector<4x1xf32> to vector<4x4xf32>
    %179 = arith.subf %175, %178 : vector<4x4xf32>
    %180 = math.exp %179 : vector<4x4xf32>
    %cst_34 = arith.constant dense<0.000000e+00> : vector<4xf32>
    %181 = vector.multi_reduction <add>, %180, %cst_34 [1] : vector<4x4xf32> to vector<4xf32>
    %182 = vector.shape_cast %181 : vector<4xf32> to vector<4x1xf32>
    %183 = tpu.reciprocal %182 {approx = true} : vector<4x1xf32> -> vector<4x1xf32>
    %184 = vector.broadcast %183 : vector<4x1xf32> to vector<4x4xf32>
    %185 = arith.mulf %180, %184 : vector<4x4xf32>
    %cst_35 = arith.constant dense<0.000000e+00> : vector<4x32xf32>
    %186 = tpu.matmul %185, %6, %cst_35 {dimension_numbers = #tpu.dot_dimension_numbers<[1], [0], [0], [1], [0, 0, 1, 1], [], []>} : vector<4x4xf32>, vector<4x32xf32>, vector<4x32xf32> -> vector<4x32xf32>
    %c0_36 = arith.constant 0 : index
    %c0_37 = arith.constant 0 : index
    %187 = vector.load %arg8[%c0_36, %c0_37] : memref<32x128xf32, #tpu.memory_space<vmem>>, vector<32x128xf32>
    %cst_38 = arith.constant dense<0.000000e+00> : vector<4x128xf32>
    %188 = tpu.matmul %174, %187, %cst_38 {dimension_numbers = #tpu.dot_dimension_numbers<[1], [0], [0], [1], [0, 0, 1, 1], [], []>} : vector<4x32xf32>, vector<32x128xf32>, vector<4x128xf32> -> vector<4x128xf32>
    %c0_39 = arith.constant 0 : index
    %c0_40 = arith.constant 0 : index
    %189 = vector.load %arg9[%c0_39, %c0_40] : memref<32x128xf32, #tpu.memory_space<vmem>>, vector<32x128xf32>
    %cst_41 = arith.constant dense<0.000000e+00> : vector<4x128xf32>
    %190 = tpu.matmul %186, %189, %cst_41 {dimension_numbers = #tpu.dot_dimension_numbers<[1], [0], [0], [1], [0, 0, 1, 1], [], []>} : vector<4x32xf32>, vector<32x128xf32>, vector<4x128xf32> -> vector<4x128xf32>
    %191 = arith.addf %188, %190 : vector<4x128xf32>
    %c0_42 = arith.constant 0 : index
    %c0_43 = arith.constant 0 : index
    %192 = vector.load %arg10[%c0_42, %c0_43] : memref<1x128xf32, #tpu.memory_space<vmem>>, vector<1x128xf32>
    %193 = vector.broadcast %192 : vector<1x128xf32> to vector<4x128xf32>
    %194 = arith.addf %191, %193 : vector<4x128xf32>
    %cst_44 = arith.constant dense<0xFF800000> : vector<4xf32>
    %195 = vector.multi_reduction <maximumf>, %194, %cst_44 [1] : vector<4x128xf32> to vector<4xf32>
    %196 = vector.shape_cast %195 : vector<4xf32> to vector<4x1xf32>
    %197 = vector.broadcast %196 : vector<4x1xf32> to vector<4x128xf32>
    %198 = arith.subf %194, %197 : vector<4x128xf32>
    %199 = math.exp %198 : vector<4x128xf32>
    %cst_45 = arith.constant dense<0.000000e+00> : vector<4xf32>
    %200 = vector.multi_reduction <add>, %199, %cst_45 [1] : vector<4x128xf32> to vector<4xf32>
    %201 = vector.shape_cast %200 : vector<4xf32> to vector<4x1xf32>
    %202 = math.log %201 : vector<4x1xf32>
    %203 = vector.broadcast %202 : vector<4x1xf32> to vector<4x128xf32>
    %204 = arith.subf %198, %203 : vector<4x128xf32>
    %c0_46 = arith.constant 0 : index
    %c0_47 = arith.constant 0 : index
    %205 = vector.load %arg11[%c0_46, %c0_47] : memref<4x128xf32, #tpu.memory_space<vmem>>, vector<4x128xf32>
    tpu.vector_store %arg11[%c0_46, %c0_47], %204 {strides = array<i32>} : memref<4x128xf32, #tpu.memory_space<vmem>>, vector<4x128xf32>,
    return
  }
  func.func @transform_0(%arg0: i32) -> (i32, i32) {
    %c0_i32 = arith.constant 0 : i32
    %c0_i32_0 = arith.constant 0 : i32
    %c0_i32_1 = arith.constant 0 : i32
    return %c0_i32, %c0_i32_0 : i32, i32
  }
  func.func @transform_1(%arg0: i32) -> (i32, i32) {
    %c0_i32 = arith.constant 0 : i32
    %c0_i32_0 = arith.constant 0 : i32
    %c0_i32_1 = arith.constant 0 : i32
    return %c0_i32, %c0_i32_0 : i32, i32
  }
  func.func @transform_2(%arg0: i32) -> (i32, i32) {
    %c0_i32 = arith.constant 0 : i32
    %c0_i32_0 = arith.constant 0 : i32
    %c0_i32_1 = arith.constant 0 : i32
    return %c0_i32, %c0_i32_0 : i32, i32
  }
  func.func @transform_3(%arg0: i32) -> (i32, i32) {
    %c0_i32 = arith.constant 0 : i32
    %c0_i32_0 = arith.constant 0 : i32
    %c0_i32_1 = arith.constant 0 : i32
    return %c0_i32, %c0_i32_0 : i32, i32
  }
  func.func @transform_4(%arg0: i32) -> (i32, i32) {
    %c0_i32 = arith.constant 0 : i32
    %c0_i32_0 = arith.constant 0 : i32
    %c0_i32_1 = arith.constant 0 : i32
    return %c0_i32, %c0_i32_0 : i32, i32
  }
  func.func @transform_5(%arg0: i32) -> (i32, i32) {
    %c0_i32 = arith.constant 0 : i32
    %c0_i32_0 = arith.constant 0 : i32
    %c0_i32_1 = arith.constant 0 : i32
    return %c0_i32, %c0_i32_0 : i32, i32
  }
  func.func @transform_6(%arg0: i32) -> (i32, i32) {
    %c0_i32 = arith.constant 0 : i32
    %c0_i32_0 = arith.constant 0 : i32
    %c0_i32_1 = arith.constant 0 : i32
    return %c0_i32, %c0_i32_0 : i32, i32
  }
  func.func @transform_7(%arg0: i32) -> (i32, i32) {
    %c0_i32 = arith.constant 0 : i32
    %c0_i32_0 = arith.constant 0 : i32
    %c0_i32_1 = arith.constant 0 : i32
    return %c0_i32, %c0_i32_0 : i32, i32
  }
  func.func @transform_8(%arg0: i32) -> (i32, i32) {
    %c0_i32 = arith.constant 0 : i32
    %c0_i32_0 = arith.constant 0 : i32
    %c0_i32_1 = arith.constant 0 : i32
    return %c0_i32, %c0_i32_0 : i32, i32
  }
  func.func @transform_9(%arg0: i32) -> (i32, i32) {
    %c0_i32 = arith.constant 0 : i32
    %c0_i32_0 = arith.constant 0 : i32
    %c0_i32_1 = arith.constant 0 : i32
    return %c0_i32, %c0_i32_0 : i32, i32
  }
  func.func @transform_10(%arg0: i32) -> (i32, i32) {
    %c0_i32 = arith.constant 0 : i32
    %c0_i32_0 = arith.constant 0 : i32
    %c0_i32_1 = arith.constant 0 : i32
    return %c0_i32, %c0_i32_0 : i32, i32
  }
}

</mosaic_0001>

<llo_original>
// kernel: tpu_custom_call.1
$region0: #{tpu_custom_call.1}
  #allocation0 [shape = 'u32[]', space=smem, size = 0x4, offset = 0x4, fixed_abs, tag = 'smem constant byte address 0x4 - core index']
  #allocation1 [shape = 'u32[144,128]{1,0:T(1,128)}', space=vmem, size = 0x12000, scoped, tag = 'internal scratch']
  %s0 = inlined_call_operand.vmem [shape: f32[8,48], index: 0, kind: input, shape index: {}]
  %s1 = inlined_call_operand.vmem [shape: f32[4,48], index: 1, kind: input, shape index: {}]
  %s2 = inlined_call_operand.vmem [shape: f32[48,32], index: 2, kind: input, shape index: {}]
  %s3 = inlined_call_operand.vmem [shape: f32[1,32], index: 3, kind: input, shape index: {}]
  %s4 = inlined_call_operand.vmem [shape: f32[48,128], index: 4, kind: input, shape index: {}]
  %s5 = inlined_call_operand.vmem [shape: f32[32,128], index: 5, kind: input, shape index: {}]
  %s6 = inlined_call_operand.vmem [shape: f32[1,128], index: 6, kind: input, shape index: {}]
  %s7 = inlined_call_operand.hbm [shape: f32[32,128], index: 7, kind: input, shape index: {}]
  %s8 = inlined_call_operand.hbm [shape: f32[32,128], index: 8, kind: input, shape index: {}]
  %s9 = inlined_call_operand.vmem [shape: f32[1,128], index: 9, kind: input, shape index: {}]
  %s10 = inlined_call_operand.hbm [shape: f32[4,128], index: 10, kind: output, shape index: {}]
  %s11 = sld [smem:[#allocation0]]
  $region58: #{tpu_custom_call.1} parent=0
    _
  %s13 = ssub.s32 1, %s11
  %s14 = scalar_select 0, %s13, %s11
  $region1: #{tpu_custom_call.1} parent=0
    #allocation2 [shape = 'u8[16384]{0}', space=vmem, size = 0x4000, scoped, tag = 'input window, operand 7, single buffered']
    #allocation3 [shape = 's32[1]{0}', space=sflag, size = 0x4, scoped, tag = 'scoped memory for tpu_custom_call.1']
    #allocation4 [shape = 's32[1]{0}', space=sflag, size = 0x4, scoped, tag = 'scoped memory for tpu_custom_call.1']
    #allocation5 [shape = 'u8[16384]{0}', space=vmem, size = 0x4000, scoped, tag = 'input window, operand 8, single buffered']
    #allocation6 [shape = 's32[1]{0}', space=sflag, size = 0x4, scoped, tag = 'scoped memory for tpu_custom_call.1']
    #allocation7 [shape = 'u8[2048]{0}', space=vmem, size = 0x800, scoped, tag = 'output window, operand 0, single buffered']
    %15 = vsyncpa [#allocation3], 0
    %16 = vsyncpa [#allocation6], 0
    %17 = vsyncpa [#allocation4], 0
    // Predicated region
    $region2: #{tpu_custom_call.1} parent=1 // pred_check
      _
    $region3: #{tpu_custom_call.1} parent=1 // pred_check_branch
      %19 = sbr.rel (0) target = $region5
    $region4: #{tpu_custom_call.1} parent=1 // pred_region
      _
    $region5: #{tpu_custom_call.1} parent=1 // pred_fallthru
      _
    // Predicated region
    $region6: #{tpu_custom_call.1} parent=1 // pred_check
      _
    $region7: #{tpu_custom_call.1} parent=1 // pred_check_branch
      %21 = sbr.rel (0) target = $region9
    $region8: #{tpu_custom_call.1} parent=1 // pred_region
      _
    $region9: #{tpu_custom_call.1} parent=1 // pred_fallthru
      _
    // Predicated region
    $region10: #{tpu_custom_call.1} parent=1 // pred_check
      _
    $region11: #{tpu_custom_call.1} parent=1 // pred_check_branch
      %23 = sbr.rel (0) target = $region13
    $region12: #{tpu_custom_call.1} parent=1 // pred_region
      _
    $region13: #{tpu_custom_call.1} parent=1 // pred_fallthru
      _
    // Predicated region
    $region14: #{tpu_custom_call.1} parent=1 // pred_check
      _
    $region15: #{tpu_custom_call.1} parent=1 // pred_check_branch
      %25 = sbr.rel (0) target = $region17
    $region16: #{tpu_custom_call.1} parent=1 // pred_region
      _
    $region17: #{tpu_custom_call.1} parent=1 // pred_fallthru
      _
    // Predicated region
    $region18: #{tpu_custom_call.1} parent=1 // pred_check
      _
    $region19: #{tpu_custom_call.1} parent=1 // pred_check_branch
      %27 = sbr.rel (0) target = $region21
    $region20: #{tpu_custom_call.1} parent=1 // pred_region
      _
    $region21: #{tpu_custom_call.1} parent=1 // pred_fallthru
      _
    // Predicated region
    $region22: #{tpu_custom_call.1} parent=1 // pred_check
      _
    $region23: #{tpu_custom_call.1} parent=1 // pred_check_branch
      %29 = sbr.rel (0) target = $region25
    $region24: #{tpu_custom_call.1} parent=1 // pred_region
      _
    $region25: #{tpu_custom_call.1} parent=1 // pred_fallthru
      _
    // Predicated region
    $region26: #{tpu_custom_call.1} parent=1 // pred_check
      _
    $region27: #{tpu_custom_call.1} parent=1 // pred_check_branch
      %31 = sbr.rel (0) target = $region29
    $region28: #{tpu_custom_call.1} parent=1 // pred_region
      _
    $region29: #{tpu_custom_call.1} parent=1 // pred_fallthru
      _
    // Predicated region
    $region30: #{tpu_custom_call.1} parent=1 // pred_check
      _
    $region31: #{tpu_custom_call.1} parent=1 // pred_check_branch
      %33 = sbr.rel (0) target = $region33
    $region32: #{tpu_custom_call.1} parent=1 // pred_region
      %s35 = ssub.s32 512, 512
      %36 = vsyncadd [#allocation3], %s35
      %s37 = sshll.u32 [#allocation2], 4
      %s38 = int_to_ptr.vmem [resolvable:$true] %s37
      %43 = dma.hbm_to_vmem [thread:$0]  %s7, 512, %s38, [#allocation3], 128, 128, 8
    $region33: #{tpu_custom_call.1} parent=1 // pred_fallthru
      _
    // Predicated region
    $region34: #{tpu_custom_call.1} parent=1 // pred_check
      _
    $region35: #{tpu_custom_call.1} parent=1 // pred_check_branch
      %45 = sbr.rel (0) target = $region37
    $region36: #{tpu_custom_call.1} parent=1 // pred_region
      %s47 = ssub.s32 512, 512
      %48 = vsyncadd [#allocation6], %s47
      %s49 = sshll.u32 [#allocation5], 4
      %s50 = int_to_ptr.vmem [resolvable:$true] %s49
      %55 = dma.hbm_to_vmem [thread:$0]  %s8, 512, %s50, [#allocation6], 128, 128, 8
    $region37: #{tpu_custom_call.1} parent=1 // pred_fallthru
      _
    // Predicated region
    $region38: #{tpu_custom_call.1} parent=1 // pred_check
      _
    $region39: #{tpu_custom_call.1} parent=1 // pred_check_branch
      %57 = sbr.rel (0) target = $region41
    $region40: #{tpu_custom_call.1} parent=1 // pred_region
      _
    $region41: #{tpu_custom_call.1} parent=1 // pred_fallthru
      _
    // Predicated region
    $region42: #{tpu_custom_call.1} parent=1 // pred_check
      _
    $region43: #{tpu_custom_call.1} parent=1 // pred_check_branch
      %59 = sbr.rel (0) target = $region45
    $region44: #{tpu_custom_call.1} parent=1 // pred_region
      %60 = dma.done [#allocation3], 512
    $region45: #{tpu_custom_call.1} parent=1 // pred_fallthru
      _
    // Predicated region
    $region46: #{tpu_custom_call.1} parent=1 // pred_check
      _
    $region47: #{tpu_custom_call.1} parent=1 // pred_check_branch
      %62 = sbr.rel (0) target = $region49
    $region48: #{tpu_custom_call.1} parent=1 // pred_region
      %63 = dma.done [#allocation6], 512
    $region49: #{tpu_custom_call.1} parent=1 // pred_fallthru
      _
    %v64 = vld [vmem:[%s1] sm:$0xf]
    %v65 = vld [vmem:[%s2] sm:$0xff]
    %v66 = vld [vmem:[%s2 + $0x8] sm:$0xff]
    %v67 = vld [vmem:[%s2 + $0x10] sm:$0xff]
    %v68 = vld [vmem:[%s2 + $0x18] sm:$0xff]
    %v69 = vld [vmem:[%s2 + $0x20] sm:$0xff]
    %v70 = vld [vmem:[%s2 + $0x28] sm:$0xff]
    %v71 = vld [vmem:[%s3] sm:$0x1]
    %v73 = vlaneseq
    %v74 = vshrl.u32 %v73, 7
    %v75 = vsub.s32 0, %v74
    %v76 = vrot.slane %v71, %v75
    %vm78 = vcmask 392192
    %v80 = vsel %vm78, %v64, 0
    %82 = vmatprep.subr.mxu0 0.0
    %83 = vmatpush1.msra.mxu0 %v65
    %84 = vmatprep.subr.mxu0 0.0
    %85 = vmatpush1.msra.mxu0 %v66
    %86 = vmatprep.subr.mxu0 0.0
    %87 = vmatpush1.msra.mxu0 %v67
    %88 = vmatprep.subr.mxu0 0.0
    %89 = vmatpush1.msra.mxu0 %v68
    %90 = vmatprep.subr.mxu0 0.0
    %91 = vmatpush1.msra.mxu0 %v69
    %92 = vmatprep.subr.mxu0 0.0
    %93 = vmatpush1.msra.mxu0 %v70
    %94 = vmatprep.subr.mxu0 0.0
    %95 = vmatpush1.msra.mxu0 0.0
    %96 = vmatprep.subr.mxu0 0.0
    %97 = vmatpush1.msra.mxu0 0.0
    %98 = vmatprep.subr.mxu0 0.0
    %99 = vmatpush1.msra.mxu0 0.0
    %100 = vmatprep.subr.mxu0 0.0
    %101 = vmatpush1.msra.mxu0 0.0
    %102 = vmatprep.subr.mxu0 0.0
    %103 = vmatpush1.msra.mxu0 0.0
    %104 = vmatprep.subr.mxu0 0.0
    %105 = vmatpush1.msra.mxu0 0.0
    %106 = vmatprep.subr.mxu0 0.0
    %107 = vmatpush1.msra.mxu0 0.0
    %108 = vmatprep.subr.mxu0 0.0
    %109 = vmatpush1.msra.mxu0 0.0
    %110 = vmatprep.subr.mxu0 0.0
    %111 = vmatpush1.msra.mxu0 0.0
    %112 = vmatprep.subr.mxu0 0.0
    %113 = vmatpush1.msra.mxu0 0.0
    %114 = vmatprep.subr.mxu0 0.0
    %115 = vmatpush1.msra.mxu0 0.0
    %116 = vmatprep.subr.mxu0 0.0
    %117 = vmatpush1.msra.mxu0 0.0
    %118 = vmatprep.subr.mxu0 0.0
    %119 = vmatpush1.msra.mxu0 0.0
    %120 = vmatprep.subr.mxu0 0.0
    %121 = vmatpush1.msra.mxu0 0.0
    %122 = vmatprep.subr.mxu0 0.0
    %123 = vmatpush1.msra.mxu0 0.0
    %124 = vmatprep.subr.mxu0 0.0
    %125 = vmatpush1.msra.mxu0 0.0
    %126 = vmatprep.subr.mxu0 0.0
    %127 = vmatpush1.msra.mxu0 0.0
    %128 = vmatprep.subr.mxu0 0.0
    %129 = vmatpush1.msra.mxu0 0.0
    %130 = vmatprep.subr.mxu0 0.0
    %131 = vmatpush1.msra.mxu0 0.0
    %132 = vmatprep.subr.mxu0 0.0
    %133 = vmatpush1.msra.mxu0 0.0
    %134 = vmatprep.subr.mxu0 0.0
    %135 = vmatpush1.msra.mxu0 0.0
    %136 = vmatprep.subr.mxu0 0.0
    %137 = vmatpush1.msra.mxu0 0.0
    %138 = vmatprep.subr.mxu0 0.0
    %139 = vmatpush1.msra.mxu0 0.0
    %140 = vmatprep.subr.mxu0 0.0
    %141 = vmatpush1.msra.mxu0 0.0
    %142 = vmatprep.subr.mxu0 0.0
    %143 = vmatpush1.msra.mxu0 0.0
    %144 = vmatprep.subr.mxu0 0.0
    %145 = vmatpush1.msra.mxu0 0.0
    %146 = vmatprep.mubr.f32.mxu0 0.0
    %147 = vmatmul.mubr.f32.gmra.mrb[0].mxu0 %v80
    %v148 = vpop.f32.mrb[0].mxu0
    %v149 = vadd.f32 %v76, %v148
    %v150 = vpop.f32.mrb[0].mxu0
    %151 = vdwg.mxu0
    %v152 = vtanh.pop %v149
    %v153 = vld [vmem:[%s0] sm:$0xff]
    %v154 = vld [vmem:[%s4] sm:$0xff]
    %v155 = vld [vmem:[%s4 + $0x8] sm:$0xff]
    %v156 = vld [vmem:[%s4 + $0x10] sm:$0xff]
    %v157 = vld [vmem:[%s4 + $0x18] sm:$0xff]
    %v158 = vld [vmem:[%s4 + $0x20] sm:$0xff]
    %v159 = vld [vmem:[%s4 + $0x28] sm:$0xff]
    %v160 = vld [vmem:[%s6] sm:$0x1]
    %v162 = vlaneseq
    %v163 = vshrl.u32 %v162, 7
    %v164 = vsub.s32 0, %v163
    %v165 = vrot.slane %v160, %v164
    %v168 = vsel %vm78, %v153, 0
    %170 = vmatprep.subr.mxu0 0.0
    %171 = vmatpush1.msra.mxu0 %v154
    %172 = vmatprep.subr.mxu0 0.0
    %173 = vmatpush1.msra.mxu0 %v155
    %174 = vmatprep.subr.mxu0 0.0
    %175 = vmatpush1.msra.mxu0 %v156
    %176 = vmatprep.subr.mxu0 0.0
    %177 = vmatpush1.msra.mxu0 %v157
    %178 = vmatprep.subr.mxu0 0.0
    %179 = vmatpush1.msra.mxu0 %v158
    %180 = vmatprep.subr.mxu0 0.0
    %181 = vmatpush1.msra.mxu0 %v159
    %182 = vmatprep.subr.mxu0 0.0
    %183 = vmatpush1.msra.mxu0 0.0
    %184 = vmatprep.subr.mxu0 0.0
    %185 = vmatpush1.msra.mxu0 0.0
    %186 = vmatprep.subr.mxu0 0.0
    %187 = vmatpush1.msra.mxu0 0.0
    %188 = vmatprep.subr.mxu0 0.0
    %189 = vmatpush1.msra.mxu0 0.0
    %190 = vmatprep.subr.mxu0 0.0
    %191 = vmatpush1.msra.mxu0 0.0
    %192 = vmatprep.subr.mxu0 0.0
    %193 = vmatpush1.msra.mxu0 0.0
    %194 = vmatprep.subr.mxu0 0.0
    %195 = vmatpush1.msra.mxu0 0.0
    %196 = vmatprep.subr.mxu0 0.0
    %197 = vmatpush1.msra.mxu0 0.0
    %198 = vmatprep.subr.mxu0 0.0
    %199 = vmatpush1.msra.mxu0 0.0
    %200 = vmatprep.subr.mxu0 0.0
    %201 = vmatpush1.msra.mxu0 0.0
    %202 = vmatprep.subr.mxu0 0.0
    %203 = vmatpush1.msra.mxu0 0.0
    %204 = vmatprep.subr.mxu0 0.0
    %205 = vmatpush1.msra.mxu0 0.0
    %206 = vmatprep.subr.mxu0 0.0
    %207 = vmatpush1.msra.mxu0 0.0
    %208 = vmatprep.subr.mxu0 0.0
    %209 = vmatpush1.msra.mxu0 0.0
    %210 = vmatprep.subr.mxu0 0.0
    %211 = vmatpush1.msra.mxu0 0.0
    %212 = vmatprep.subr.mxu0 0.0
    %213 = vmatpush1.msra.mxu0 0.0
    %214 = vmatprep.subr.mxu0 0.0
    %215 = vmatpush1.msra.mxu0 0.0
    %216 = vmatprep.subr.mxu0 0.0
    %217 = vmatpush1.msra.mxu0 0.0
    %218 = vmatprep.subr.mxu0 0.0
    %219 = vmatpush1.msra.mxu0 0.0
    %220 = vmatprep.subr.mxu0 0.0
    %221 = vmatpush1.msra.mxu0 0.0
    %222 = vmatprep.subr.mxu0 0.0
    %223 = vmatpush1.msra.mxu0 0.0
    %224 = vmatprep.subr.mxu0 0.0
    %225 = vmatpush1.msra.mxu0 0.0
    %226 = vmatprep.subr.mxu0 0.0
    %227 = vmatpush1.msra.mxu0 0.0
    %228 = vmatprep.subr.mxu0 0.0
    %229 = vmatpush1.msra.mxu0 0.0
    %230 = vmatprep.subr.mxu0 0.0
    %231 = vmatpush1.msra.mxu0 0.0
    %232 = vmatprep.subr.mxu0 0.0
    %233 = vmatpush1.msra.mxu0 0.0
    %234 = vmatprep.mubr.f32.mxu0 0.0
    %235 = vmatmul.mubr.f32.gmra.mrb[0].mxu0 %v168
    %v236 = vpop.f32.mrb[0].mxu0
    %v237 = vadd.f32 %v165, %v236
    %v238 = vpop.f32.mrb[0].mxu0
    %239 = vdwg.mxu0
    %v240 = vld [vmem:[%s5] sm:$0xff]
    %v241 = vld [vmem:[%s5 + $0x8] sm:$0xff]
    %v242 = vld [vmem:[%s5 + $0x10] sm:$0xff]
    %v243 = vld [vmem:[%s5 + $0x18] sm:$0xff]
    %v244 = vlaneseq
    %v245 = vand.u32 %v244, 127
    %vm246 = vcmp.ge.s32.totalorder %v245, 64
    %vm247 = vcmp.lt.s32.totalorder %v245, 96
    %vm248 = vmand %vm246, %vm247
    %vm249 = vcmask 261120
    %v251 = vsel %vm249, 0.0, 0
    %253 = vmatprep.subr.mxu0 0.0
    %254 = vmatpush1.msra.mxu0 %v240
    %255 = vmatprep.subr.mxu0 0.0
    %256 = vmatpush1.msra.mxu0 %v241
    %257 = vmatprep.subr.mxu0 0.0
    %258 = vmatpush1.msra.mxu0 %v242
    %259 = vmatprep.subr.mxu0 0.0
    %260 = vmatpush1.msra.mxu0 %v243
    %261 = vmatprep.subr.mxu0 0.0
    %262 = vmatpush1.msra.mxu0 0.0
    %263 = vmatprep.subr.mxu0 0.0
    %264 = vmatpush1.msra.mxu0 0.0
    %265 = vmatprep.subr.mxu0 0.0
    %266 = vmatpush1.msra.mxu0 0.0
    %267 = vmatprep.subr.mxu0 0.0
    %268 = vmatpush1.msra.mxu0 0.0
    %269 = vmatprep.subr.mxu0 0.0
    %270 = vmatpush1.msra.mxu0 0.0
    %271 = vmatprep.subr.mxu0 0.0
    %272 = vmatpush1.msra.mxu0 0.0
    %273 = vmatprep.subr.mxu0 0.0
    %274 = vmatpush1.msra.mxu0 0.0
    %275 = vmatprep.subr.mxu0 0.0
    %276 = vmatpush1.msra.mxu0 0.0
    %277 = vmatprep.subr.mxu0 0.0
    %278 = vmatpush1.msra.mxu0 0.0
    %279 = vmatprep.subr.mxu0 0.0
    %280 = vmatpush1.msra.mxu0 0.0
    %281 = vmatprep.subr.mxu0 0.0
    %282 = vmatpush1.msra.mxu0 0.0
    %283 = vmatprep.subr.mxu0 0.0
    %284 = vmatpush1.msra.mxu0 0.0
    %285 = vmatprep.subr.mxu0 0.0
    %286 = vmatpush1.msra.mxu0 0.0
    %287 = vmatprep.subr.mxu0 0.0
    %288 = vmatpush1.msra.mxu0 0.0
    %289 = vmatprep.subr.mxu0 0.0
    %290 = vmatpush1.msra.mxu0 0.0
    %291 = vmatprep.subr.mxu0 0.0
    %292 = vmatpush1.msra.mxu0 0.0
    %293 = vmatprep.subr.mxu0 0.0
    %294 = vmatpush1.msra.mxu0 0.0
    %295 = vmatprep.subr.mxu0 0.0
    %296 = vmatpush1.msra.mxu0 0.0
    %297 = vmatprep.subr.mxu0 0.0
    %298 = vmatpush1.msra.mxu0 0.0
    %299 = vmatprep.subr.mxu0 0.0
    %300 = vmatpush1.msra.mxu0 0.0
    %301 = vmatprep.subr.mxu0 0.0
    %302 = vmatpush1.msra.mxu0 0.0
    %303 = vmatprep.subr.mxu0 0.0
    %304 = vmatpush1.msra.mxu0 0.0
    %305 = vmatprep.subr.mxu0 0.0
    %306 = vmatpush1.msra.mxu0 0.0
    %307 = vmatprep.subr.mxu0 0.0
    %308 = vmatpush1.msra.mxu0 0.0
    %309 = vmatprep.subr.mxu0 0.0
    %310 = vmatpush1.msra.mxu0 0.0
    %311 = vmatprep.subr.mxu0 0.0
    %312 = vmatpush1.msra.mxu0 0.0
    %313 = vmatprep.subr.mxu0 0.0
    %314 = vmatpush1.msra.mxu0 0.0
    %315 = vmatprep.subr.mxu0 0.0
    %316 = vmatpush1.msra.mxu0 0.0
    %317 = vmatprep.mubr.f32.mxu0 0.0
    %318 = vmatmul.mubr.f32.gmra.mrb[0].mxu0 %v251
    %v319 = vpop.f32.mrb[0].mxu0
    %v320 = vadd.f32 0.0, %v319
    %v321 = vpop.f32.mrb[0].mxu0
    %322 = vdwg.mxu0
    %v323 = vadd.f32 %v237, %v320
    %v324 = vtanh.pop %v323
    %v325 = vxor.u32 %v323, 2147483648
    %v326 = vmul.f32 %v325, 1.442695
    %v327 = vpow.pop %v326
    %v328 = vadd.f32 %v327, 1.0
    %v329 = vrcp.pop %v328
    %v330 = vmul.f32 1.0, %v329
    %v331 = vsel %vm248, %v324, %v330
    %v332 = vmul.f32 %v331, 0.0
    %334 = vrot.lane.b32.xlu0 %v331, 64
    %v335 = vpop.permute.xlu0 %334
    %v337 = vmul.f32 %v331, %v335
    %339 = vrot.lane.b32.xlu0 %v337, 32
    %v340 = vpop.permute.xlu0 %339
    %v342 = vadd.f32 %v332, %v340
    %v343 = vtanh.pop %v342
    %345 = vrot.lane.b32.xlu0 %v343, 64
    %v346 = vpop.permute.xlu0 %345
    %v348 = vmul.f32 %v331, %v346
    %350 = vrot.lane.b32.xlu0 %v348, 32
    %v351 = vpop.permute.xlu0 %350
    %v352 = vsel %vm249, %v351, 0
    %354 = vmatprep.subr.mxu0 0.0
    %355 = vmatpush1.msra.mxu0 %v240
    %356 = vmatprep.subr.mxu0 0.0
    %357 = vmatpush1.msra.mxu0 %v241
    %358 = vmatprep.subr.mxu0 0.0
    %359 = vmatpush1.msra.mxu0 %v242
    %360 = vmatprep.subr.mxu0 0.0
    %361 = vmatpush1.msra.mxu0 %v243
    %362 = vmatprep.subr.mxu0 0.0
    %363 = vmatpush1.msra.mxu0 0.0
    %364 = vmatprep.subr.mxu0 0.0
    %365 = vmatpush1.msra.mxu0 0.0
    %366 = vmatprep.subr.mxu0 0.0
    %367 = vmatpush1.msra.mxu0 0.0
    %368 = vmatprep.subr.mxu0 0.0
    %369 = vmatpush1.msra.mxu0 0.0
    %370 = vmatprep.subr.mxu0 0.0
    %371 = vmatpush1.msra.mxu0 0.0
    %372 = vmatprep.subr.mxu0 0.0
    %373 = vmatpush1.msra.mxu0 0.0
    %374 = vmatprep.subr.mxu0 0.0
    %375 = vmatpush1.msra.mxu0 0.0
    %376 = vmatprep.subr.mxu0 0.0
    %377 = vmatpush1.msra.mxu0 0.0
    %378 = vmatprep.subr.mxu0 0.0
    %379 = vmatpush1.msra.mxu0 0.0
    %380 = vmatprep.subr.mxu0 0.0
    %381 = vmatpush1.msra.mxu0 0.0
    %382 = vmatprep.subr.mxu0 0.0
    %383 = vmatpush1.msra.mxu0 0.0
    %384 = vmatprep.subr.mxu0 0.0
    %385 = vmatpush1.msra.mxu0 0.0
    %386 = vmatprep.subr.mxu0 0.0
    %387 = vmatpush1.msra.mxu0 0.0
    %388 = vmatprep.subr.mxu0 0.0
    %389 = vmatpush1.msra.mxu0 0.0
    %390 = vmatprep.subr.mxu0 0.0
    %391 = vmatpush1.msra.mxu0 0.0
    %392 = vmatprep.subr.mxu0 0.0
    %393 = vmatpush1.msra.mxu0 0.0
    %394 = vmatprep.subr.mxu0 0.0
    %395 = vmatpush1.msra.mxu0 0.0
    %396 = vmatprep.subr.mxu0 0.0
    %397 = vmatpush1.msra.mxu0 0.0
    %398 = vmatprep.subr.mxu0 0.0
    %399 = vmatpush1.msra.mxu0 0.0
    %400 = vmatprep.subr.mxu0 0.0
    %401 = vmatpush1.msra.mxu0 0.0
    %402 = vmatprep.subr.mxu0 0.0
    %403 = vmatpush1.msra.mxu0 0.0
    %404 = vmatprep.subr.mxu0 0.0
    %405 = vmatpush1.msra.mxu0 0.0
    %406 = vmatprep.subr.mxu0 0.0
    %407 = vmatpush1.msra.mxu0 0.0
    %408 = vmatprep.subr.mxu0 0.0
    %409 = vmatpush1.msra.mxu0 0.0
    %410 = vmatprep.subr.mxu0 0.0
    %411 = vmatpush1.msra.mxu0 0.0
    %412 = vmatprep.subr.mxu0 0.0
    %413 = vmatpush1.msra.mxu0 0.0
    %414 = vmatprep.subr.mxu0 0.0
    %415 = vmatpush1.msra.mxu0 0.0
    %416 = vmatprep.subr.mxu0 0.0
    %417 = vmatpush1.msra.mxu0 0.0
    %418 = vmatprep.mubr.f32.mxu0 0.0
    %419 = vmatmul.mubr.f32.gmra.mrb[0].mxu0 %v352
    %v420 = vpop.f32.mrb[0].mxu0
    %v421 = vadd.f32 0.0, %v420
    %v422 = vpop.f32.mrb[0].mxu0
    %423 = vdwg.mxu0
    %v425 = vrot.slane %v421, 7
    %v427 = vadd.f32 %v237, %v425
    %v428 = vtanh.pop %v427
    %v429 = vxor.u32 %v427, 2147483648
    %v430 = vmul.f32 %v429, 1.442695
    %v431 = vpow.pop %v430
    %v432 = vadd.f32 %v431, 1.0
    %v433 = vrcp.pop %v432
    %v434 = vmul.f32 1.0, %v433
    %v435 = vsel %vm248, %v428, %v434
    %v437 = vrot.slane %v342, 7
    %v439 = vmul.f32 %v435, %v437
    %441 = vrot.lane.b32.xlu0 %v435, 64
    %v442 = vpop.permute.xlu0 %441
    %v444 = vmul.f32 %v435, %v442
    %446 = vrot.lane.b32.xlu0 %v444, 32
    %v447 = vpop.permute.xlu0 %446
    %v449 = vadd.f32 %v439, %v447
    %v450 = vtanh.pop %v449
    %452 = vrot.lane.b32.xlu0 %v450, 64
    %v453 = vpop.permute.xlu0 %452
    %v455 = vmul.f32 %v435, %v453
    %v457 = vrot.slane %v455, 1
    %458 = vrot.lane.b32.xlu0 %v457, 32
    %v459 = vpop.permute.xlu0 %458
    %v460 = vsel %vm249, %v459, 0
    %462 = vmatprep.subr.mxu0 0.0
    %463 = vmatpush1.msra.mxu0 %v240
    %464 = vmatprep.subr.mxu0 0.0
    %465 = vmatpush1.msra.mxu0 %v241
    %466 = vmatprep.subr.mxu0 0.0
    %467 = vmatpush1.msra.mxu0 %v242
    %468 = vmatprep.subr.mxu0 0.0
    %469 = vmatpush1.msra.mxu0 %v243
    %470 = vmatprep.subr.mxu0 0.0
    %471 = vmatpush1.msra.mxu0 0.0
    %472 = vmatprep.subr.mxu0 0.0
    %473 = vmatpush1.msra.mxu0 0.0
    %474 = vmatprep.subr.mxu0 0.0
    %475 = vmatpush1.msra.mxu0 0.0
    %476 = vmatprep.subr.mxu0 0.0
    %477 = vmatpush1.msra.mxu0 0.0
    %478 = vmatprep.subr.mxu0 0.0
    %479 = vmatpush1.msra.mxu0 0.0
    %480 = vmatprep.subr.mxu0 0.0
    %481 = vmatpush1.msra.mxu0 0.0
    %482 = vmatprep.subr.mxu0 0.0
    %483 = vmatpush1.msra.mxu0 0.0
    %484 = vmatprep.subr.mxu0 0.0
    %485 = vmatpush1.msra.mxu0 0.0
    %486 = vmatprep.subr.mxu0 0.0
    %487 = vmatpush1.msra.mxu0 0.0
    %488 = vmatprep.subr.mxu0 0.0
    %489 = vmatpush1.msra.mxu0 0.0
    %490 = vmatprep.subr.mxu0 0.0
    %491 = vmatpush1.msra.mxu0 0.0
    %492 = vmatprep.subr.mxu0 0.0
    %493 = vmatpush1.msra.mxu0 0.0
    %494 = vmatprep.subr.mxu0 0.0
    %495 = vmatpush1.msra.mxu0 0.0
    %496 = vmatprep.subr.mxu0 0.0
    %497 = vmatpush1.msra.mxu0 0.0
    %498 = vmatprep.subr.mxu0 0.0
    %499 = vmatpush1.msra.mxu0 0.0
    %500 = vmatprep.subr.mxu0 0.0
    %501 = vmatpush1.msra.mxu0 0.0
    %502 = vmatprep.subr.mxu0 0.0
    %503 = vmatpush1.msra.mxu0 0.0
    %504 = vmatprep.subr.mxu0 0.0
    %505 = vmatpush1.msra.mxu0 0.0
    %506 = vmatprep.subr.mxu0 0.0
    %507 = vmatpush1.msra.mxu0 0.0
    %508 = vmatprep.subr.mxu0 0.0
    %509 = vmatpush1.msra.mxu0 0.0
    %510 = vmatprep.subr.mxu0 0.0
    %511 = vmatpush1.msra.mxu0 0.0
    %512 = vmatprep.subr.mxu0 0.0
    %513 = vmatpush1.msra.mxu0 0.0
    %514 = vmatprep.subr.mxu0 0.0
    %515 = vmatpush1.msra.mxu0 0.0
    %516 = vmatprep.subr.mxu0 0.0
    %517 = vmatpush1.msra.mxu0 0.0
    %518 = vmatprep.subr.mxu0 0.0
    %519 = vmatpush1.msra.mxu0 0.0
    %520 = vmatprep.subr.mxu0 0.0
    %521 = vmatpush1.msra.mxu0 0.0
    %522 = vmatprep.subr.mxu0 0.0
    %523 = vmatpush1.msra.mxu0 0.0
    %524 = vmatprep.subr.mxu0 0.0
    %525 = vmatpush1.msra.mxu0 0.0
    %526 = vmatprep.mubr.f32.mxu0 0.0
    %527 = vmatmul.mubr.f32.gmra.mrb[0].mxu0 %v460
    %v528 = vpop.f32.mrb[0].mxu0
    %v529 = vadd.f32 0.0, %v528
    %v530 = vpop.f32.mrb[0].mxu0
    %531 = vdwg.mxu0
    %v533 = vrot.slane %v529, 6
    %v535 = vadd.f32 %v237, %v533
    %v536 = vtanh.pop %v535
    %v537 = vxor.u32 %v535, 2147483648
    %v538 = vmul.f32 %v537, 1.442695
    %v539 = vpow.pop %v538
    %v540 = vadd.f32 %v539, 1.0
    %v541 = vrcp.pop %v540
    %v542 = vmul.f32 1.0, %v541
    %v543 = vsel %vm248, %v536, %v542
    %v545 = vrot.slane %v449, 7
    %v547 = vmul.f32 %v543, %v545
    %549 = vrot.lane.b32.xlu0 %v543, 64
    %v550 = vpop.permute.xlu0 %549
    %v552 = vmul.f32 %v543, %v550
    %554 = vrot.lane.b32.xlu0 %v552, 32
    %v555 = vpop.permute.xlu0 %554
    %v557 = vadd.f32 %v547, %v555
    %v558 = vtanh.pop %v557
    %560 = vrot.lane.b32.xlu0 %v558, 64
    %v561 = vpop.permute.xlu0 %560
    %v563 = vmul.f32 %v543, %v561
    %v565 = vrot.slane %v563, 2
    %566 = vrot.lane.b32.xlu0 %v565, 32
    %v567 = vpop.permute.xlu0 %566
    %v568 = vsel %vm249, %v567, 0
    %570 = vmatprep.subr.mxu0 0.0
    %571 = vmatpush1.msra.mxu0 %v240
    %572 = vmatprep.subr.mxu0 0.0
    %573 = vmatpush1.msra.mxu0 %v241
    %574 = vmatprep.subr.mxu0 0.0
    %575 = vmatpush1.msra.mxu0 %v242
    %576 = vmatprep.subr.mxu0 0.0
    %577 = vmatpush1.msra.mxu0 %v243
    %578 = vmatprep.subr.mxu0 0.0
    %579 = vmatpush1.msra.mxu0 0.0
    %580 = vmatprep.subr.mxu0 0.0
    %581 = vmatpush1.msra.mxu0 0.0
    %582 = vmatprep.subr.mxu0 0.0
    %583 = vmatpush1.msra.mxu0 0.0
    %584 = vmatprep.subr.mxu0 0.0
    %585 = vmatpush1.msra.mxu0 0.0
    %586 = vmatprep.subr.mxu0 0.0
    %587 = vmatpush1.msra.mxu0 0.0
    %588 = vmatprep.subr.mxu0 0.0
    %589 = vmatpush1.msra.mxu0 0.0
    %590 = vmatprep.subr.mxu0 0.0
    %591 = vmatpush1.msra.mxu0 0.0
    %592 = vmatprep.subr.mxu0 0.0
    %593 = vmatpush1.msra.mxu0 0.0
    %594 = vmatprep.subr.mxu0 0.0
    %595 = vmatpush1.msra.mxu0 0.0
    %596 = vmatprep.subr.mxu0 0.0
    %597 = vmatpush1.msra.mxu0 0.0
    %598 = vmatprep.subr.mxu0 0.0
    %599 = vmatpush1.msra.mxu0 0.0
    %600 = vmatprep.subr.mxu0 0.0
    %601 = vmatpush1.msra.mxu0 0.0
    %602 = vmatprep.subr.mxu0 0.0
    %603 = vmatpush1.msra.mxu0 0.0
    %604 = vmatprep.subr.mxu0 0.0
    %605 = vmatpush1.msra.mxu0 0.0
    %606 = vmatprep.subr.mxu0 0.0
    %607 = vmatpush1.msra.mxu0 0.0
    %608 = vmatprep.subr.mxu0 0.0
    %609 = vmatpush1.msra.mxu0 0.0
    %610 = vmatprep.subr.mxu0 0.0
    %611 = vmatpush1.msra.mxu0 0.0
    %612 = vmatprep.subr.mxu0 0.0
    %613 = vmatpush1.msra.mxu0 0.0
    %614 = vmatprep.subr.mxu0 0.0
    %615 = vmatpush1.msra.mxu0 0.0
    %616 = vmatprep.subr.mxu0 0.0
    %617 = vmatpush1.msra.mxu0 0.0
    %618 = vmatprep.subr.mxu0 0.0
    %619 = vmatpush1.msra.mxu0 0.0
    %620 = vmatprep.subr.mxu0 0.0
    %621 = vmatpush1.msra.mxu0 0.0
    %622 = vmatprep.subr.mxu0 0.0
    %623 = vmatpush1.msra.mxu0 0.0
    %624 = vmatprep.subr.mxu0 0.0
    %625 = vmatpush1.msra.mxu0 0.0
    %626 = vmatprep.subr.mxu0 0.0
    %627 = vmatpush1.msra.mxu0 0.0
    %628 = vmatprep.subr.mxu0 0.0
    %629 = vmatpush1.msra.mxu0 0.0
    %630 = vmatprep.subr.mxu0 0.0
    %631 = vmatpush1.msra.mxu0 0.0
    %632 = vmatprep.subr.mxu0 0.0
    %633 = vmatpush1.msra.mxu0 0.0
    %634 = vmatprep.mubr.f32.mxu0 0.0
    %635 = vmatmul.mubr.f32.gmra.mrb[0].mxu0 %v568
    %v636 = vpop.f32.mrb[0].mxu0
    %v637 = vadd.f32 0.0, %v636
    %v638 = vpop.f32.mrb[0].mxu0
    %639 = vdwg.mxu0
    %v641 = vrot.slane %v637, 5
    %v643 = vadd.f32 %v237, %v641
    %v644 = vtanh.pop %v643
    %v645 = vxor.u32 %v643, 2147483648
    %v646 = vmul.f32 %v645, 1.442695
    %v647 = vpow.pop %v646
    %v648 = vadd.f32 %v647, 1.0
    %v649 = vrcp.pop %v648
    %v650 = vmul.f32 1.0, %v649
    %v651 = vsel %vm248, %v644, %v650
    %v653 = vrot.slane %v557, 7
    %v655 = vmul.f32 %v651, %v653
    %657 = vrot.lane.b32.xlu0 %v651, 64
    %v658 = vpop.permute.xlu0 %657
    %v660 = vmul.f32 %v651, %v658
    %662 = vrot.lane.b32.xlu0 %v660, 32
    %v663 = vpop.permute.xlu0 %662
    %v665 = vadd.f32 %v655, %v663
    %v666 = vtanh.pop %v665
    %668 = vrot.lane.b32.xlu0 %v666, 64
    %v669 = vpop.permute.xlu0 %668
    %v671 = vmul.f32 %v651, %v669
    %v673 = vrot.slane %v671, 3
    %674 = vrot.lane.b32.xlu0 %v673, 32
    %v675 = vpop.permute.xlu0 %674
    %v676 = vsel %vm249, %v675, 0
    %678 = vmatprep.subr.mxu0 0.0
    %679 = vmatpush1.msra.mxu0 %v240
    %680 = vmatprep.subr.mxu0 0.0
    %681 = vmatpush1.msra.mxu0 %v241
    %682 = vmatprep.subr.mxu0 0.0
    %683 = vmatpush1.msra.mxu0 %v242
    %684 = vmatprep.subr.mxu0 0.0
    %685 = vmatpush1.msra.mxu0 %v243
    %686 = vmatprep.subr.mxu0 0.0
    %687 = vmatpush1.msra.mxu0 0.0
    %688 = vmatprep.subr.mxu0 0.0
    %689 = vmatpush1.msra.mxu0 0.0
    %690 = vmatprep.subr.mxu0 0.0
    %691 = vmatpush1.msra.mxu0 0.0
    %692 = vmatprep.subr.mxu0 0.0
    %693 = vmatpush1.msra.mxu0 0.0
    %694 = vmatprep.subr.mxu0 0.0
    %695 = vmatpush1.msra.mxu0 0.0
    %696 = vmatprep.subr.mxu0 0.0
    %697 = vmatpush1.msra.mxu0 0.0
    %698 = vmatprep.subr.mxu0 0.0
    %699 = vmatpush1.msra.mxu0 0.0
    %700 = vmatprep.subr.mxu0 0.0
    %701 = vmatpush1.msra.mxu0 0.0
    %702 = vmatprep.subr.mxu0 0.0
    %703 = vmatpush1.msra.mxu0 0.0
    %704 = vmatprep.subr.mxu0 0.0
    %705 = vmatpush1.msra.mxu0 0.0
    %706 = vmatprep.subr.mxu0 0.0
    %707 = vmatpush1.msra.mxu0 0.0
    %708 = vmatprep.subr.mxu0 0.0
    %709 = vmatpush1.msra.mxu0 0.0
    %710 = vmatprep.subr.mxu0 0.0
    %711 = vmatpush1.msra.mxu0 0.0
    %712 = vmatprep.subr.mxu0 0.0
    %713 = vmatpush1.msra.mxu0 0.0
    %714 = vmatprep.subr.mxu0 0.0
    %715 = vmatpush1.msra.mxu0 0.0
    %716 = vmatprep.subr.mxu0 0.0
    %717 = vmatpush1.msra.mxu0 0.0
    %718 = vmatprep.subr.mxu0 0.0
    %719 = vmatpush1.msra.mxu0 0.0
    %720 = vmatprep.subr.mxu0 0.0
    %721 = vmatpush1.msra.mxu0 0.0
    %722 = vmatprep.subr.mxu0 0.0
    %723 = vmatpush1.msra.mxu0 0.0
    %724 = vmatprep.subr.mxu0 0.0
    %725 = vmatpush1.msra.mxu0 0.0
    %726 = vmatprep.subr.mxu0 0.0
    %727 = vmatpush1.msra.mxu0 0.0
    %728 = vmatprep.subr.mxu0 0.0
    %729 = vmatpush1.msra.mxu0 0.0
    %730 = vmatprep.subr.mxu0 0.0
    %731 = vmatpush1.msra.mxu0 0.0
    %732 = vmatprep.subr.mxu0 0.0
    %733 = vmatpush1.msra.mxu0 0.0
    %734 = vmatprep.subr.mxu0 0.0
    %735 = vmatpush1.msra.mxu0 0.0
    %736 = vmatprep.subr.mxu0 0.0
    %737 = vmatpush1.msra.mxu0 0.0
    %738 = vmatprep.subr.mxu0 0.0
    %739 = vmatpush1.msra.mxu0 0.0
    %740 = vmatprep.subr.mxu0 0.0
    %741 = vmatpush1.msra.mxu0 0.0
    %742 = vmatprep.mubr.f32.mxu0 0.0
    %743 = vmatmul.mubr.f32.gmra.mrb[0].mxu0 %v676
    %v744 = vpop.f32.mrb[0].mxu0
    %v745 = vadd.f32 0.0, %v744
    %v746 = vpop.f32.mrb[0].mxu0
    %747 = vdwg.mxu0
    %v749 = vrot.slane %v745, 4
    %v751 = vadd.f32 %v237, %v749
    %v752 = vtanh.pop %v751
    %v753 = vxor.u32 %v751, 2147483648
    %v754 = vmul.f32 %v753, 1.442695
    %v755 = vpow.pop %v754
    %v756 = vadd.f32 %v755, 1.0
    %v757 = vrcp.pop %v756
    %v758 = vmul.f32 1.0, %v757
    %v759 = vsel %vm248, %v752, %v758
    %v761 = vrot.slane %v665, 7
    %v763 = vmul.f32 %v759, %v761
    %765 = vrot.lane.b32.xlu0 %v759, 64
    %v766 = vpop.permute.xlu0 %765
    %v768 = vmul.f32 %v759, %v766
    %770 = vrot.lane.b32.xlu0 %v768, 32
    %v771 = vpop.permute.xlu0 %770
    %v773 = vadd.f32 %v763, %v771
    %v774 = vtanh.pop %v773
    %776 = vrot.lane.b32.xlu0 %v774, 64
    %v777 = vpop.permute.xlu0 %776
    %v779 = vmul.f32 %v759, %v777
    %v781 = vrot.slane %v779, 4
    %782 = vrot.lane.b32.xlu0 %v781, 32
    %v783 = vpop.permute.xlu0 %782
    %v784 = vsel %vm249, %v783, 0
    %786 = vmatprep.subr.mxu0 0.0
    %787 = vmatpush1.msra.mxu0 %v240
    %788 = vmatprep.subr.mxu0 0.0
    %789 = vmatpush1.msra.mxu0 %v241
    %790 = vmatprep.subr.mxu0 0.0
    %791 = vmatpush1.msra.mxu0 %v242
    %792 = vmatprep.subr.mxu0 0.0
    %793 = vmatpush1.msra.mxu0 %v243
    %794 = vmatprep.subr.mxu0 0.0
    %795 = vmatpush1.msra.mxu0 0.0
    %796 = vmatprep.subr.mxu0 0.0
    %797 = vmatpush1.msra.mxu0 0.0
    %798 = vmatprep.subr.mxu0 0.0
    %799 = vmatpush1.msra.mxu0 0.0
    %800 = vmatprep.subr.mxu0 0.0
    %801 = vmatpush1.msra.mxu0 0.0
    %802 = vmatprep.subr.mxu0 0.0
    %803 = vmatpush1.msra.mxu0 0.0
    %804 = vmatprep.subr.mxu0 0.0
    %805 = vmatpush1.msra.mxu0 0.0
    %806 = vmatprep.subr.mxu0 0.0
    %807 = vmatpush1.msra.mxu0 0.0
    %808 = vmatprep.subr.mxu0 0.0
    %809 = vmatpush1.msra.mxu0 0.0
    %810 = vmatprep.subr.mxu0 0.0
    %811 = vmatpush1.msra.mxu0 0.0
    %812 = vmatprep.subr.mxu0 0.0
    %813 = vmatpush1.msra.mxu0 0.0
    %814 = vmatprep.subr.mxu0 0.0
    %815 = vmatpush1.msra.mxu0 0.0
    %816 = vmatprep.subr.mxu0 0.0
    %817 = vmatpush1.msra.mxu0 0.0
    %818 = vmatprep.subr.mxu0 0.0
    %819 = vmatpush1.msra.mxu0 0.0
    %820 = vmatprep.subr.mxu0 0.0
    %821 = vmatpush1.msra.mxu0 0.0
    %822 = vmatprep.subr.mxu0 0.0
    %823 = vmatpush1.msra.mxu0 0.0
    %824 = vmatprep.subr.mxu0 0.0
    %825 = vmatpush1.msra.mxu0 0.0
    %826 = vmatprep.subr.mxu0 0.0
    %827 = vmatpush1.msra.mxu0 0.0
    %828 = vmatprep.subr.mxu0 0.0
    %829 = vmatpush1.msra.mxu0 0.0
    %830 = vmatprep.subr.mxu0 0.0
    %831 = vmatpush1.msra.mxu0 0.0
    %832 = vmatprep.subr.mxu0 0.0
    %833 = vmatpush1.msra.mxu0 0.0
    %834 = vmatprep.subr.mxu0 0.0
    %835 = vmatpush1.msra.mxu0 0.0
    %836 = vmatprep.subr.mxu0 0.0
    %837 = vmatpush1.msra.mxu0 0.0
    %838 = vmatprep.subr.mxu0 0.0
    %839 = vmatpush1.msra.mxu0 0.0
    %840 = vmatprep.subr.mxu0 0.0
    %841 = vmatpush1.msra.mxu0 0.0
    %842 = vmatprep.subr.mxu0 0.0
    %843 = vmatpush1.msra.mxu0 0.0
    %844 = vmatprep.subr.mxu0 0.0
    %845 = vmatpush1.msra.mxu0 0.0
    %846 = vmatprep.subr.mxu0 0.0
    %847 = vmatpush1.msra.mxu0 0.0
    %848 = vmatprep.subr.mxu0 0.0
    %849 = vmatpush1.msra.mxu0 0.0
    %850 = vmatprep.mubr.f32.mxu0 0.0
    %851 = vmatmul.mubr.f32.gmra.mrb[0].mxu0 %v784
    %v852 = vpop.f32.mrb[0].mxu0
    %v853 = vadd.f32 0.0, %v852
    %v854 = vpop.f32.mrb[0].mxu0
    %855 = vdwg.mxu0
    %v857 = vrot.slane %v853, 3
    %v859 = vadd.f32 %v237, %v857
    %v860 = vtanh.pop %v859
    %v861 = vxor.u32 %v859, 2147483648
    %v862 = vmul.f32 %v861, 1.442695
    %v863 = vpow.pop %v862
    %v864 = vadd.f32 %v863, 1.0
    %v865 = vrcp.pop %v864
    %v866 = vmul.f32 1.0, %v865
    %v867 = vsel %vm248, %v860, %v866
    %v869 = vrot.slane %v773, 7
    %v871 = vmul.f32 %v867, %v869
    %873 = vrot.lane.b32.xlu0 %v867, 64
    %v874 = vpop.permute.xlu0 %873
    %v876 = vmul.f32 %v867, %v874
    %878 = vrot.lane.b32.xlu0 %v876, 32
    %v879 = vpop.permute.xlu0 %878
    %v881 = vadd.f32 %v871, %v879
    %v882 = vtanh.pop %v881
    %884 = vrot.lane.b32.xlu0 %v882, 64
    %v885 = vpop.permute.xlu0 %884
    %v887 = vmul.f32 %v867, %v885
    %v889 = vrot.slane %v887, 5
    %890 = vrot.lane.b32.xlu0 %v889, 32
    %v891 = vpop.permute.xlu0 %890
    %v892 = vsel %vm249, %v891, 0
    %894 = vmatprep.subr.mxu0 0.0
    %895 = vmatpush1.msra.mxu0 %v240
    %896 = vmatprep.subr.mxu0 0.0
    %897 = vmatpush1.msra.mxu0 %v241
    %898 = vmatprep.subr.mxu0 0.0
    %899 = vmatpush1.msra.mxu0 %v242
    %900 = vmatprep.subr.mxu0 0.0
    %901 = vmatpush1.msra.mxu0 %v243
    %902 = vmatprep.subr.mxu0 0.0
    %903 = vmatpush1.msra.mxu0 0.0
    %904 = vmatprep.subr.mxu0 0.0
    %905 = vmatpush1.msra.mxu0 0.0
    %906 = vmatprep.subr.mxu0 0.0
    %907 = vmatpush1.msra.mxu0 0.0
    %908 = vmatprep.subr.mxu0 0.0
    %909 = vmatpush1.msra.mxu0 0.0
    %910 = vmatprep.subr.mxu0 0.0
    %911 = vmatpush1.msra.mxu0 0.0
    %912 = vmatprep.subr.mxu0 0.0
    %913 = vmatpush1.msra.mxu0 0.0
    %914 = vmatprep.subr.mxu0 0.0
    %915 = vmatpush1.msra.mxu0 0.0
    %916 = vmatprep.subr.mxu0 0.0
    %917 = vmatpush1.msra.mxu0 0.0
    %918 = vmatprep.subr.mxu0 0.0
    %919 = vmatpush1.msra.mxu0 0.0
    %920 = vmatprep.subr.mxu0 0.0
    %921 = vmatpush1.msra.mxu0 0.0
    %922 = vmatprep.subr.mxu0 0.0
    %923 = vmatpush1.msra.mxu0 0.0
    %924 = vmatprep.subr.mxu0 0.0
    %925 = vmatpush1.msra.mxu0 0.0
    %926 = vmatprep.subr.mxu0 0.0
    %927 = vmatpush1.msra.mxu0 0.0
    %928 = vmatprep.subr.mxu0 0.0
    %929 = vmatpush1.msra.mxu0 0.0
    %930 = vmatprep.subr.mxu0 0.0
    %931 = vmatpush1.msra.mxu0 0.0
    %932 = vmatprep.subr.mxu0 0.0
    %933 = vmatpush1.msra.mxu0 0.0
    %934 = vmatprep.subr.mxu0 0.0
    %935 = vmatpush1.msra.mxu0 0.0
    %936 = vmatprep.subr.mxu0 0.0
    %937 = vmatpush1.msra.mxu0 0.0
    %938 = vmatprep.subr.mxu0 0.0
    %939 = vmatpush1.msra.mxu0 0.0
    %940 = vmatprep.subr.mxu0 0.0
    %941 = vmatpush1.msra.mxu0 0.0
    %942 = vmatprep.subr.mxu0 0.0
    %943 = vmatpush1.msra.mxu0 0.0
    %944 = vmatprep.subr.mxu0 0.0
    %945 = vmatpush1.msra.mxu0 0.0
    %946 = vmatprep.subr.mxu0 0.0
    %947 = vmatpush1.msra.mxu0 0.0
    %948 = vmatprep.subr.mxu0 0.0
    %949 = vmatpush1.msra.mxu0 0.0
    %950 = vmatprep.subr.mxu0 0.0
    %951 = vmatpush1.msra.mxu0 0.0
    %952 = vmatprep.subr.mxu0 0.0
    %953 = vmatpush1.msra.mxu0 0.0
    %954 = vmatprep.subr.mxu0 0.0
    %955 = vmatpush1.msra.mxu0 0.0
    %956 = vmatprep.subr.mxu0 0.0
    %957 = vmatpush1.msra.mxu0 0.0
    %958 = vmatprep.mubr.f32.mxu0 0.0
    %959 = vmatmul.mubr.f32.gmra.mrb[0].mxu0 %v892
    %v960 = vpop.f32.mrb[0].mxu0
    %v961 = vadd.f32 0.0, %v960
    %v962 = vpop.f32.mrb[0].mxu0
    %963 = vdwg.mxu0
    %v965 = vrot.slane %v961, 2
    %v967 = vadd.f32 %v237, %v965
    %v968 = vtanh.pop %v967
    %v969 = vxor.u32 %v967, 2147483648
    %v970 = vmul.f32 %v969, 1.442695
    %v971 = vpow.pop %v970
    %v972 = vadd.f32 %v971, 1.0
    %v973 = vrcp.pop %v972
    %v974 = vmul.f32 1.0, %v973
    %v975 = vsel %vm248, %v968, %v974
    %v977 = vrot.slane %v881, 7
    %v979 = vmul.f32 %v975, %v977
    %981 = vrot.lane.b32.xlu0 %v975, 64
    %v982 = vpop.permute.xlu0 %981
    %v984 = vmul.f32 %v975, %v982
    %986 = vrot.lane.b32.xlu0 %v984, 32
    %v987 = vpop.permute.xlu0 %986
    %v989 = vadd.f32 %v979, %v987
    %v990 = vtanh.pop %v989
    %992 = vrot.lane.b32.xlu0 %v990, 64
    %v993 = vpop.permute.xlu0 %992
    %v995 = vmul.f32 %v975, %v993
    %v997 = vrot.slane %v995, 6
    %998 = vrot.lane.b32.xlu0 %v997, 32
    %v999 = vpop.permute.xlu0 %998
    %v1000 = vsel %vm249, %v999, 0
    %1002 = vmatprep.subr.mxu0 0.0
    %1003 = vmatpush1.msra.mxu0 %v240
    %1004 = vmatprep.subr.mxu0 0.0
    %1005 = vmatpush1.msra.mxu0 %v241
    %1006 = vmatprep.subr.mxu0 0.0
    %1007 = vmatpush1.msra.mxu0 %v242
    %1008 = vmatprep.subr.mxu0 0.0
    %1009 = vmatpush1.msra.mxu0 %v243
    %1010 = vmatprep.subr.mxu0 0.0
    %1011 = vmatpush1.msra.mxu0 0.0
    %1012 = vmatprep.subr.mxu0 0.0
    %1013 = vmatpush1.msra.mxu0 0.0
    %1014 = vmatprep.subr.mxu0 0.0
    %1015 = vmatpush1.msra.mxu0 0.0
    %1016 = vmatprep.subr.mxu0 0.0
    %1017 = vmatpush1.msra.mxu0 0.0
    %1018 = vmatprep.subr.mxu0 0.0
    %1019 = vmatpush1.msra.mxu0 0.0
    %1020 = vmatprep.subr.mxu0 0.0
    %1021 = vmatpush1.msra.mxu0 0.0
    %1022 = vmatprep.subr.mxu0 0.0
    %1023 = vmatpush1.msra.mxu0 0.0
    %1024 = vmatprep.subr.mxu0 0.0
    %1025 = vmatpush1.msra.mxu0 0.0
    %1026 = vmatprep.subr.mxu0 0.0
    %1027 = vmatpush1.msra.mxu0 0.0
    %1028 = vmatprep.subr.mxu0 0.0
    %1029 = vmatpush1.msra.mxu0 0.0
    %1030 = vmatprep.subr.mxu0 0.0
    %1031 = vmatpush1.msra.mxu0 0.0
    %1032 = vmatprep.subr.mxu0 0.0
    %1033 = vmatpush1.msra.mxu0 0.0
    %1034 = vmatprep.subr.mxu0 0.0
    %1035 = vmatpush1.msra.mxu0 0.0
    %1036 = vmatprep.subr.mxu0 0.0
    %1037 = vmatpush1.msra.mxu0 0.0
    %1038 = vmatprep.subr.mxu0 0.0
    %1039 = vmatpush1.msra.mxu0 0.0
    %1040 = vmatprep.subr.mxu0 0.0
    %1041 = vmatpush1.msra.mxu0 0.0
    %1042 = vmatprep.subr.mxu0 0.0
    %1043 = vmatpush1.msra.mxu0 0.0
    %1044 = vmatprep.subr.mxu0 0.0
    %1045 = vmatpush1.msra.mxu0 0.0
    %1046 = vmatprep.subr.mxu0 0.0
    %1047 = vmatpush1.msra.mxu0 0.0
    %1048 = vmatprep.subr.mxu0 0.0
    %1049 = vmatpush1.msra.mxu0 0.0
    %1050 = vmatprep.subr.mxu0 0.0
    %1051 = vmatpush1.msra.mxu0 0.0
    %1052 = vmatprep.subr.mxu0 0.0
    %1053 = vmatpush1.msra.mxu0 0.0
    %1054 = vmatprep.subr.mxu0 0.0
    %1055 = vmatpush1.msra.mxu0 0.0
    %1056 = vmatprep.subr.mxu0 0.0
    %1057 = vmatpush1.msra.mxu0 0.0
    %1058 = vmatprep.subr.mxu0 0.0
    %1059 = vmatpush1.msra.mxu0 0.0
    %1060 = vmatprep.subr.mxu0 0.0
    %1061 = vmatpush1.msra.mxu0 0.0
    %1062 = vmatprep.subr.mxu0 0.0
    %1063 = vmatpush1.msra.mxu0 0.0
    %1064 = vmatprep.subr.mxu0 0.0
    %1065 = vmatpush1.msra.mxu0 0.0
    %1066 = vmatprep.mubr.f32.mxu0 0.0
    %1067 = vmatmul.mubr.f32.gmra.mrb[0].mxu0 %v1000
    %v1068 = vpop.f32.mrb[0].mxu0
    %v1069 = vadd.f32 0.0, %v1068
    %v1070 = vpop.f32.mrb[0].mxu0
    %1071 = vdwg.mxu0
    %v1073 = vrot.slane %v1069, 1
    %v1075 = vadd.f32 %v237, %v1073
    %v1076 = vtanh.pop %v1075
    %v1077 = vxor.u32 %v1075, 2147483648
    %v1078 = vmul.f32 %v1077, 1.442695
    %v1079 = vpow.pop %v1078
    %v1080 = vadd.f32 %v1079, 1.0
    %v1081 = vrcp.pop %v1080
    %v1082 = vmul.f32 1.0, %v1081
    %v1083 = vsel %vm248, %v1076, %v1082
    %v1085 = vrot.slane %v989, 7
    %v1087 = vmul.f32 %v1083, %v1085
    %1089 = vrot.lane.b32.xlu0 %v1083, 64
    %v1090 = vpop.permute.xlu0 %1089
    %v1092 = vmul.f32 %v1083, %v1090
    %1094 = vrot.lane.b32.xlu0 %v1092, 32
    %v1095 = vpop.permute.xlu0 %1094
    %v1097 = vadd.f32 %v1087, %v1095
    %v1098 = vtanh.pop %v1097
    %1100 = vrot.lane.b32.xlu0 %v1098, 64
    %v1101 = vpop.permute.xlu0 %1100
    %v1103 = vmul.f32 %v1083, %v1101
    %v1105 = vrot.slane %v887, 4
    %v1107 = vrot.slane %v995, 4
    %v1110 = vrot.slane %v1103, 4
    %vm1112 = vcmask 1040384
    %v1113 = vsel %vm1112, %v781, %v1105
    %vm1114 = vcmask 1041408
    %v1115 = vsel %vm1114, %v1113, %v1107
    %vm1116 = vcmask 1042432
    %v1117 = vsel %vm1116, %v1115, %v1110
    %1119 = vrot.lane.b32.xlu0 %v1117, 32
    %v1120 = vpop.permute.xlu0 %1119
    %v1121 = vsel %vm249, %v1120, 0
    %v1124 = vsel %vm249, %v152, 0
    %1126 = vmatprep.subr.mxu0 0.0
    %1127 = vmatpush1.xpose.msra.mxu0 %v1124
    %1128 = vmatprep.subr.mxu0 0.0
    %1129 = vmatpush1.xpose.msra.mxu0 0.0
    %1130 = vmatprep.subr.mxu0 0.0
    %1131 = vmatpush1.xpose.msra.mxu0 0.0
    %1132 = vmatprep.subr.mxu0 0.0
    %1133 = vmatpush1.xpose.msra.mxu0 0.0
    %1134 = vmatprep.subr.mxu0 0.0
    %1135 = vmatpush1.xpose.msra.mxu0 0.0
    %1136 = vmatprep.subr.mxu0 0.0
    %1137 = vmatpush1.xpose.msra.mxu0 0.0
    %1138 = vmatprep.subr.mxu0 0.0
    %1139 = vmatpush1.xpose.msra.mxu0 0.0
    %1140 = vmatprep.subr.mxu0 0.0
    %1141 = vmatpush1.xpose.msra.mxu0 0.0
    %1142 = vmatprep.subr.mxu0 0.0
    %1143 = vmatpush1.xpose.msra.mxu0 0.0
    %1144 = vmatprep.subr.mxu0 0.0
    %1145 = vmatpush1.xpose.msra.mxu0 0.0
    %1146 = vmatprep.subr.mxu0 0.0
    %1147 = vmatpush1.xpose.msra.mxu0 0.0
    %1148 = vmatprep.subr.mxu0 0.0
    %1149 = vmatpush1.xpose.msra.mxu0 0.0
    %1150 = vmatprep.subr.mxu0 0.0
    %1151 = vmatpush1.xpose.msra.mxu0 0.0
    %1152 = vmatprep.subr.mxu0 0.0
    %1153 = vmatpush1.xpose.msra.mxu0 0.0
    %1154 = vmatprep.subr.mxu0 0.0
    %1155 = vmatpush1.xpose.msra.mxu0 0.0
    %1156 = vmatprep.subr.mxu0 0.0
    %1157 = vmatpush1.xpose.msra.mxu0 0.0
    %1158 = vmatprep.subr.mxu0 0.0
    %1159 = vmatpush1.xpose.msra.mxu0 0.0
    %1160 = vmatprep.subr.mxu0 0.0
    %1161 = vmatpush1.xpose.msra.mxu0 0.0
    %1162 = vmatprep.subr.mxu0 0.0
    %1163 = vmatpush1.xpose.msra.mxu0 0.0
    %1164 = vmatprep.subr.mxu0 0.0
    %1165 = vmatpush1.xpose.msra.mxu0 0.0
    %1166 = vmatprep.subr.mxu0 0.0
    %1167 = vmatpush1.xpose.msra.mxu0 0.0
    %1168 = vmatprep.subr.mxu0 0.0
    %1169 = vmatpush1.xpose.msra.mxu0 0.0
    %1170 = vmatprep.subr.mxu0 0.0
    %1171 = vmatpush1.xpose.msra.mxu0 0.0
    %1172 = vmatprep.subr.mxu0 0.0
    %1173 = vmatpush1.xpose.msra.mxu0 0.0
    %1174 = vmatprep.subr.mxu0 0.0
    %1175 = vmatpush1.xpose.msra.mxu0 0.0
    %1176 = vmatprep.subr.mxu0 0.0
    %1177 = vmatpush1.xpose.msra.mxu0 0.0
    %1178 = vmatprep.subr.mxu0 0.0
    %1179 = vmatpush1.xpose.msra.mxu0 0.0
    %1180 = vmatprep.subr.mxu0 0.0
    %1181 = vmatpush1.xpose.msra.mxu0 0.0
    %1182 = vmatprep.subr.mxu0 0.0
    %1183 = vmatpush1.xpose.msra.mxu0 0.0
    %1184 = vmatprep.subr.mxu0 0.0
    %1185 = vmatpush1.xpose.msra.mxu0 0.0
    %1186 = vmatprep.subr.mxu0 0.0
    %1187 = vmatpush1.xpose.msra.mxu0 0.0
    %1188 = vmatprep.subr.mxu0 0.0
    %1189 = vmatpush1.xpose.msra.mxu0 0.0
    %1190 = vmatprep.mubr.f32.mxu0 0.0
    %1191 = vmatmul.mubr.f32.gmra.mrb[0].mxu0 %v1121
    %v1192 = vpop.f32.mrb[0].mxu0
    %v1193 = vadd.f32 0.0, %v1192
    %v1194 = vpop.f32.mrb[0].mxu0
    %1195 = vdwg.mxu0
    %vm1196 = vcmask 27648
    %v1197 = vsel %vm1196, %v1193, -inf
    %1198 = vmax.xlane.f32.xlu0 %v1197
    %v1199 = vpop.xlane.xlu0 %1198
    %v1200 = vsub.f32 %v1193, %v1199
    %v1201 = vmul.f32 %v1200, 1.442695
    %v1202 = vpow.pop %v1201
    %v1203 = vsel %vm1196, %v1202, 0.0
    %1204 = vadd.xlane.f32.xlu0 %v1203
    %v1205 = vpop.xlane.xlu0 %1204
    %v1206 = vrcp.pop %v1205
    %v1207 = vmul.f32 %v1202, %v1206
    %vm1208 = vcmask 31744
    %v1210 = vsel %vm1208, %v1207, 0
    %vm1212 = vcmask 1043456
    %v1213 = vsel %vm1212, %v152, 0
    %1215 = vmatprep.subr.mxu0 0.0
    %1216 = vmatpush1.msra.mxu0 %v1213
    %1217 = vmatprep.subr.mxu0 0.0
    %1218 = vmatpush1.msra.mxu0 0.0
    %1219 = vmatprep.subr.mxu0 0.0
    %1220 = vmatpush1.msra.mxu0 0.0
    %1221 = vmatprep.subr.mxu0 0.0
    %1222 = vmatpush1.msra.mxu0 0.0
    %1223 = vmatprep.subr.mxu0 0.0
    %1224 = vmatpush1.msra.mxu0 0.0
    %1225 = vmatprep.subr.mxu0 0.0
    %1226 = vmatpush1.msra.mxu0 0.0
    %1227 = vmatprep.subr.mxu0 0.0
    %1228 = vmatpush1.msra.mxu0 0.0
    %1229 = vmatprep.subr.mxu0 0.0
    %1230 = vmatpush1.msra.mxu0 0.0
    %1231 = vmatprep.subr.mxu0 0.0
    %1232 = vmatpush1.msra.mxu0 0.0
    %1233 = vmatprep.subr.mxu0 0.0
    %1234 = vmatpush1.msra.mxu0 0.0
    %1235 = vmatprep.subr.mxu0 0.0
    %1236 = vmatpush1.msra.mxu0 0.0
    %1237 = vmatprep.subr.mxu0 0.0
    %1238 = vmatpush1.msra.mxu0 0.0
    %1239 = vmatprep.subr.mxu0 0.0
    %1240 = vmatpush1.msra.mxu0 0.0
    %1241 = vmatprep.subr.mxu0 0.0
    %1242 = vmatpush1.msra.mxu0 0.0
    %1243 = vmatprep.subr.mxu0 0.0
    %1244 = vmatpush1.msra.mxu0 0.0
    %1245 = vmatprep.subr.mxu0 0.0
    %1246 = vmatpush1.msra.mxu0 0.0
    %1247 = vmatprep.subr.mxu0 0.0
    %1248 = vmatpush1.msra.mxu0 0.0
    %1249 = vmatprep.subr.mxu0 0.0
    %1250 = vmatpush1.msra.mxu0 0.0
    %1251 = vmatprep.subr.mxu0 0.0
    %1252 = vmatpush1.msra.mxu0 0.0
    %1253 = vmatprep.subr.mxu0 0.0
    %1254 = vmatpush1.msra.mxu0 0.0
    %1255 = vmatprep.subr.mxu0 0.0
    %1256 = vmatpush1.msra.mxu0 0.0
    %1257 = vmatprep.subr.mxu0 0.0
    %1258 = vmatpush1.msra.mxu0 0.0
    %1259 = vmatprep.subr.mxu0 0.0
    %1260 = vmatpush1.msra.mxu0 0.0
    %1261 = vmatprep.subr.mxu0 0.0
    %1262 = vmatpush1.msra.mxu0 0.0
    %1263 = vmatprep.subr.mxu0 0.0
    %1264 = vmatpush1.msra.mxu0 0.0
    %1265 = vmatprep.subr.mxu0 0.0
    %1266 = vmatpush1.msra.mxu0 0.0
    %1267 = vmatprep.subr.mxu0 0.0
    %1268 = vmatpush1.msra.mxu0 0.0
    %1269 = vmatprep.subr.mxu0 0.0
    %1270 = vmatpush1.msra.mxu0 0.0
    %1271 = vmatprep.subr.mxu0 0.0
    %1272 = vmatpush1.msra.mxu0 0.0
    %1273 = vmatprep.subr.mxu0 0.0
    %1274 = vmatpush1.msra.mxu0 0.0
    %1275 = vmatprep.subr.mxu0 0.0
    %1276 = vmatpush1.msra.mxu0 0.0
    %1277 = vmatprep.subr.mxu0 0.0
    %1278 = vmatpush1.msra.mxu0 0.0
    %1279 = vmatprep.mubr.f32.mxu0 0.0
    %1280 = vmatmul.mubr.f32.gmra.mrb[0].mxu0 %v1210
    %v1281 = vpop.f32.mrb[0].mxu0
    %v1282 = vadd.f32 0.0, %v1281
    %v1283 = vpop.f32.mrb[0].mxu0
    %1284 = vdwg.mxu0
    %v1285 = vld [vmem:[#allocation2] sm:$0xff]
    %v1286 = vld [vmem:[#allocation2 + $0x8] sm:$0xff]
    %v1287 = vld [vmem:[#allocation2 + $0x10] sm:$0xff]
    %v1288 = vld [vmem:[#allocation2 + $0x18] sm:$0xff]
    %v1289 = vld [vmem:[#allocation5] sm:$0xff]
    %v1290 = vld [vmem:[#allocation5 + $0x8] sm:$0xff]
    %v1291 = vld [vmem:[#allocation5 + $0x10] sm:$0xff]
    %v1292 = vld [vmem:[#allocation5 + $0x18] sm:$0xff]
    %v1294 = vsel %vm249, %v1282, 0
    %1296 = vmatprep.subr.mxu0 0.0
    %1297 = vmatpush1.msra.mxu0 %v1289
    %1298 = vmatprep.subr.mxu0 0.0
    %1299 = vmatpush1.msra.mxu0 %v1290
    %1300 = vmatprep.subr.mxu0 0.0
    %1301 = vmatpush1.msra.mxu0 %v1291
    %1302 = vmatprep.subr.mxu0 0.0
    %1303 = vmatpush1.msra.mxu0 %v1292
    %1304 = vmatprep.subr.mxu0 0.0
    %1305 = vmatpush1.msra.mxu0 0.0
    %1306 = vmatprep.subr.mxu0 0.0
    %1307 = vmatpush1.msra.mxu0 0.0
    %1308 = vmatprep.subr.mxu0 0.0
    %1309 = vmatpush1.msra.mxu0 0.0
    %1310 = vmatprep.subr.mxu0 0.0
    %1311 = vmatpush1.msra.mxu0 0.0
    %1312 = vmatprep.subr.mxu0 0.0
    %1313 = vmatpush1.msra.mxu0 0.0
    %1314 = vmatprep.subr.mxu0 0.0
    %1315 = vmatpush1.msra.mxu0 0.0
    %1316 = vmatprep.subr.mxu0 0.0
    %1317 = vmatpush1.msra.mxu0 0.0
    %1318 = vmatprep.subr.mxu0 0.0
    %1319 = vmatpush1.msra.mxu0 0.0
    %1320 = vmatprep.subr.mxu0 0.0
    %1321 = vmatpush1.msra.mxu0 0.0
    %1322 = vmatprep.subr.mxu0 0.0
    %1323 = vmatpush1.msra.mxu0 0.0
    %1324 = vmatprep.subr.mxu0 0.0
    %1325 = vmatpush1.msra.mxu0 0.0
    %1326 = vmatprep.subr.mxu0 0.0
    %1327 = vmatpush1.msra.mxu0 0.0
    %1328 = vmatprep.subr.mxu0 0.0
    %1329 = vmatpush1.msra.mxu0 0.0
    %1330 = vmatprep.subr.mxu0 0.0
    %1331 = vmatpush1.msra.mxu0 0.0
    %1332 = vmatprep.subr.mxu0 0.0
    %1333 = vmatpush1.msra.mxu0 0.0
    %1334 = vmatprep.subr.mxu0 0.0
    %1335 = vmatpush1.msra.mxu0 0.0
    %1336 = vmatprep.subr.mxu0 0.0
    %1337 = vmatpush1.msra.mxu0 0.0
    %1338 = vmatprep.subr.mxu0 0.0
    %1339 = vmatpush1.msra.mxu0 0.0
    %1340 = vmatprep.subr.mxu0 0.0
    %1341 = vmatpush1.msra.mxu0 0.0
    %1342 = vmatprep.subr.mxu0 0.0
    %1343 = vmatpush1.msra.mxu0 0.0
    %1344 = vmatprep.subr.mxu0 0.0
    %1345 = vmatpush1.msra.mxu0 0.0
    %1346 = vmatprep.subr.mxu0 0.0
    %1347 = vmatpush1.msra.mxu0 0.0
    %1348 = vmatprep.subr.mxu0 0.0
    %1349 = vmatpush1.msra.mxu0 0.0
    %1350 = vmatprep.subr.mxu0 0.0
    %1351 = vmatpush1.msra.mxu0 0.0
    %1352 = vmatprep.subr.mxu0 0.0
    %1353 = vmatpush1.msra.mxu0 0.0
    %1354 = vmatprep.subr.mxu0 0.0
    %1355 = vmatpush1.msra.mxu0 0.0
    %1356 = vmatprep.subr.mxu0 0.0
    %1357 = vmatpush1.msra.mxu0 0.0
    %1358 = vmatprep.subr.mxu0 0.0
    %1359 = vmatpush1.msra.mxu0 0.0
    %1360 = vmatprep.mubr.f32.mxu0 0.0
    %1361 = vmatmul.mubr.f32.gmra.mrb[0].mxu0 %v1294
    %v1362 = vpop.f32.mrb[0].mxu0
    %v1363 = vadd.f32 0.0, %v1362
    %v1364 = vpop.f32.mrb[0].mxu0
    %1365 = vdwg.mxu0
    %1366 = vmatprep.subr.mxu0 0.0
    %1367 = vmatpush1.msra.mxu0 %v1285
    %1368 = vmatprep.subr.mxu0 0.0
    %1369 = vmatpush1.msra.mxu0 %v1286
    %1370 = vmatprep.subr.mxu0 0.0
    %1371 = vmatpush1.msra.mxu0 %v1287
    %1372 = vmatprep.subr.mxu0 0.0
    %1373 = vmatpush1.msra.mxu0 %v1288
    %1374 = vmatprep.subr.mxu0 0.0
    %1375 = vmatpush1.msra.mxu0 0.0
    %1376 = vmatprep.subr.mxu0 0.0
    %1377 = vmatpush1.msra.mxu0 0.0
    %1378 = vmatprep.subr.mxu0 0.0
    %1379 = vmatpush1.msra.mxu0 0.0
    %1380 = vmatprep.subr.mxu0 0.0
    %1381 = vmatpush1.msra.mxu0 0.0
    %1382 = vmatprep.subr.mxu0 0.0
    %1383 = vmatpush1.msra.mxu0 0.0
    %1384 = vmatprep.subr.mxu0 0.0
    %1385 = vmatpush1.msra.mxu0 0.0
    %1386 = vmatprep.subr.mxu0 0.0
    %1387 = vmatpush1.msra.mxu0 0.0
    %1388 = vmatprep.subr.mxu0 0.0
    %1389 = vmatpush1.msra.mxu0 0.0
    %1390 = vmatprep.subr.mxu0 0.0
    %1391 = vmatpush1.msra.mxu0 0.0
    %1392 = vmatprep.subr.mxu0 0.0
    %1393 = vmatpush1.msra.mxu0 0.0
    %1394 = vmatprep.subr.mxu0 0.0
    %1395 = vmatpush1.msra.mxu0 0.0
    %1396 = vmatprep.subr.mxu0 0.0
    %1397 = vmatpush1.msra.mxu0 0.0
    %1398 = vmatprep.subr.mxu0 0.0
    %1399 = vmatpush1.msra.mxu0 0.0
    %1400 = vmatprep.subr.mxu0 0.0
    %1401 = vmatpush1.msra.mxu0 0.0
    %1402 = vmatprep.subr.mxu0 0.0
    %1403 = vmatpush1.msra.mxu0 0.0
    %1404 = vmatprep.subr.mxu0 0.0
    %1405 = vmatpush1.msra.mxu0 0.0
    %1406 = vmatprep.subr.mxu0 0.0
    %1407 = vmatpush1.msra.mxu0 0.0
    %1408 = vmatprep.subr.mxu0 0.0
    %1409 = vmatpush1.msra.mxu0 0.0
    %1410 = vmatprep.subr.mxu0 0.0
    %1411 = vmatpush1.msra.mxu0 0.0
    %1412 = vmatprep.subr.mxu0 0.0
    %1413 = vmatpush1.msra.mxu0 0.0
    %1414 = vmatprep.subr.mxu0 0.0
    %1415 = vmatpush1.msra.mxu0 0.0
    %1416 = vmatprep.subr.mxu0 0.0
    %1417 = vmatpush1.msra.mxu0 0.0
    %1418 = vmatprep.subr.mxu0 0.0
    %1419 = vmatpush1.msra.mxu0 0.0
    %1420 = vmatprep.subr.mxu0 0.0
    %1421 = vmatpush1.msra.mxu0 0.0
    %1422 = vmatprep.subr.mxu0 0.0
    %1423 = vmatpush1.msra.mxu0 0.0
    %1424 = vmatprep.subr.mxu0 0.0
    %1425 = vmatpush1.msra.mxu0 0.0
    %1426 = vmatprep.subr.mxu0 0.0
    %1427 = vmatpush1.msra.mxu0 0.0
    %1428 = vmatprep.subr.mxu0 0.0
    %1429 = vmatpush1.msra.mxu0 0.0
    %1430 = vmatprep.mubr.f32.mxu0 0.0
    %1431 = vmatmul.mubr.f32.gmra.mrb[0].mxu0 %v1121
    %v1432 = vpop.f32.mrb[0].mxu0
    %v1433 = vadd.f32 %v1363, %v1432
    %v1434 = vpop.f32.mrb[0].mxu0
    %1435 = vdwg.mxu0
    %v1436 = vld [vmem:[%s9] sm:$0x1]
    %v1438 = vlaneseq
    %v1439 = vshrl.u32 %v1438, 7
    %v1440 = vsub.s32 0, %v1439
    %v1441 = vrot.slane %v1436, %v1440
    %v1443 = vadd.f32 %v1433, %v1441
    %v1444 = vsel %vm1212, %v1443, -inf
    %1445 = vmax.xlane.f32.xlu0 %v1444
    %v1446 = vpop.xlane.xlu0 %1445
    %v1447 = vsub.f32 %v1443, %v1446
    %v1448 = vmul.f32 %v1447, 1.442695
    %v1449 = vpow.pop %v1448
    %v1450 = vsel %vm1212, %v1449, 0.0
    %1451 = vadd.xlane.f32.xlu0 %v1450
    %v1452 = vpop.xlane.xlu0 %1451
    %v1453 = vlog2.pop %v1452
    %v1454 = vmul.f32 %v1453, 0.6931472
    %v1455 = vsub.f32 %v1447, %v1454
    %1456 = vst [vmem:[#allocation7] sm:$0xf] %v1455
    // Predicated region
    $region50: #{tpu_custom_call.1} parent=1 // pred_check
      _
    $region51: #{tpu_custom_call.1} parent=1 // pred_check_branch
      %1458 = sbr.rel (0) target = $region53
    $region52: #{tpu_custom_call.1} parent=1 // pred_region
      %s1460 = ssub.s32 64, 64
      %1461 = vsyncadd [#allocation4], %s1460
      %s1463 = sshll.u32 [#allocation7], 4
      %s1464 = int_to_ptr.vmem [resolvable:$true] %s1463
      %1466 = dma.vmem_to_hbm [thread:$0]  %s1464, 64, %s10, [#allocation4]
    $region53: #{tpu_custom_call.1} parent=1 // pred_fallthru
      _
    // Predicated region
    $region54: #{tpu_custom_call.1} parent=1 // pred_check
      _
    $region55: #{tpu_custom_call.1} parent=1 // pred_check_branch
      %1468 = sbr.rel (0) target = $region57
    $region56: #{tpu_custom_call.1} parent=1 // pred_region
      %1469 = dma.done [#allocation4], 64
    $region57: #{tpu_custom_call.1} parent=1 // pred_fallthru
      _
    %1470 = vsyncpa [#allocation3], 1
    %1471 = vsyncpa [#allocation6], 1
    %1472 = vsyncpa [#allocation4], 1

</llo_original>
